<compile_context>
chip_gen: v5e
topology: v5e:2x2
jax: 0.10.0
libtpu: 0.0.40
codegen_flags: <defaults>
</compile_context>

<pallas_src>
import jax
import jax.numpy as jnp
from jax.experimental import pallas as pl
from jax.experimental.pallas import tpu as pltpu

CLSNUM = 128                 # self.classnum (checkpoint-defined in the original)
FEAT = 9605                  # TResNet num_classes -> feature width seen by the head
FEAT_PAD = 9728              # 76 * 128 : lane-aligned, zero-padded feature width
NSPLIT = 2                   # leading "parallel" axis (both TensorCores on v7x)
KSTEPS = 2                   # K-reduction steps per split
N_TILES = NSPLIT * KSTEPS    # 4 contiguous weight tiles total
TK = FEAT_PAD // N_TILES     # 2432 : multiple of 128, ~19 f32 vregs for (8, TK)
S2D = 4                      # TResNet stem space-to-depth block size


def tres_head_kernel(pooled_ref, wb_ref, bb_ref, wh_ref, bh_ref, out_ref):
    # pooled_ref: (B_PAD, cin) bf16      wb_ref: (cin, TK) bf16   bb_ref: (1, TK) f32
    # wh_ref:     (TK, CLSNUM) bf16      bh_ref: (1, CLSNUM) f32
    # out_ref:    (B_PAD, CLSNUM) f32    (resident partial for this split)
    c = pl.program_id(0)
    k = pl.program_id(1)

    @pl.when(k == 0)
    def _():
        out_ref[...] = jnp.zeros_like(out_ref)

    # surrogate self.net(x), one FEAT tile: project pooled features
    feats = jnp.dot(pooled_ref[...], wb_ref[...],
                    preferred_element_type=jnp.float32)           # (B_PAD, TK) f32
    feats = feats + bb_ref[...]

    # self.relu (padded columns have zero weight+bias -> stay exactly 0)
    h = jnp.maximum(feats, 0.0).astype(wh_ref.dtype)              # bf16 for MXU

    # self.output = nn.Linear(9605, CLSNUM): accumulate this tile's contribution
    out_ref[...] += jnp.dot(h, wh_ref[...],
                            preferred_element_type=jnp.float32)   # (B_PAD, CLSNUM)

    # add the output bias exactly once (last K step of split 0)
    @pl.when(jnp.logical_and(k == pl.num_programs(1) - 1, c == 0))
    def _():
        out_ref[...] += bh_ref[...]


def prepare_tres_params(wb, bb, wh, bh):
    """One-time weight prep (do this at init and cache the result).

    Pads FEAT -> FEAT_PAD with zeros, casts to bf16, and pre-tiles so every
    grid step DMAs one contiguous slab.  Padded bb columns and padded wh rows
    are exactly 0, which keeps ReLU/Linear semantics on the padded lanes.
    """
    cin = wb.shape[0]
    wb_p = jnp.zeros((cin, FEAT_PAD), jnp.bfloat16).at[:, :FEAT].set(
        wb.astype(jnp.bfloat16))
    bb_p = jnp.zeros((1, FEAT_PAD), jnp.float32).at[:, :FEAT].set(
        bb.astype(jnp.float32))
    wh_p = jnp.zeros((FEAT_PAD, CLSNUM), jnp.bfloat16).at[:FEAT, :].set(
        wh.astype(jnp.bfloat16))

    wb_t = wb_p.reshape(cin, N_TILES, TK).transpose(1, 0, 2)   # (N_TILES, cin, TK)
    bb_t = bb_p.reshape(1, N_TILES, TK).transpose(1, 0, 2)     # (N_TILES, 1, TK)
    wh_t = wh_p.reshape(N_TILES, TK, CLSNUM)                   # (N_TILES, TK, CLSNUM)
    bh_p = bh.astype(jnp.float32).reshape(1, CLSNUM)
    return {"wb": wb_t, "bb": bb_t, "wh": wh_t, "bh": bh_p}


@jax.jit
def tres_forward(x, params):
    """x: (B, 3, H, W) float32, NCHW.  params: output of prepare_tres_params.
    Returns (B, CLSNUM) float32."""
    B, C, H, W = x.shape
    assert H % S2D == 0 and W % S2D == 0

    # ---- glue (plain JAX): surrogate stem = space-to-depth + global avg pool ----
    xs = x.reshape(B, C, H // S2D, S2D, W // S2D, S2D)
    xs = xs.transpose(0, 1, 3, 5, 2, 4).reshape(B, C * S2D * S2D, H // S2D, W // S2D)
    pooled = xs.mean(axis=(2, 3))                                 # (B, cin)
    cin = pooled.shape[1]

    # pad batch to a sublane multiple so output stores are unmasked
    b_pad = max(8, ((B + 7) // 8) * 8)
    pooled_p = jnp.zeros((b_pad, cin), jnp.bfloat16).at[:B].set(
        pooled.astype(jnp.bfloat16))

    wb_t, bb_t, wh_t, bh_p = params["wb"], params["bb"], params["wh"], params["bh"]
    assert wb_t.shape == (N_TILES, cin, TK)

    flops = 2 * b_pad * (cin * FEAT_PAD + FEAT_PAD * CLSNUM)
    bytes_accessed = (pooled_p.size * 2 + wb_t.size * 2 + bb_t.size * 4
                      + wh_t.size * 2 + bh_p.size * 4
                      + NSPLIT * b_pad * CLSNUM * 4)

    # ---- hot path: fused (matmul + bias + relu + matmul) K-reduction,
    #      split across NSPLIT partials (both TCs on v7x) ----
    partials = pl.pallas_call(
        tres_head_kernel,
        out_shape=jax.ShapeDtypeStruct((NSPLIT, b_pad, CLSNUM), jnp.float32),
        grid=(NSPLIT, KSTEPS),
        in_specs=[
            pl.BlockSpec((b_pad, cin),       lambda c, k: (0, 0)),              # pooled (resident)
            pl.BlockSpec((None, cin, TK),    lambda c, k: (c * KSTEPS + k, 0, 0)),  # wb tile (contig)
            pl.BlockSpec((None, 1, TK),      lambda c, k: (c * KSTEPS + k, 0, 0)),  # bb tile
            pl.BlockSpec((None, TK, CLSNUM), lambda c, k: (c * KSTEPS + k, 0, 0)),  # wh tile (contig)
            pl.BlockSpec((1, CLSNUM),        lambda c, k: (0, 0)),              # bh (resident)
        ],
        out_specs=pl.BlockSpec((None, b_pad, CLSNUM), lambda c, k: (c, 0, 0)),
        compiler_params=pltpu.CompilerParams(
            dimension_semantics=("parallel", "arbitrary")),
        cost_estimate=pl.CostEstimate(
            flops=flops, transcendentals=0, bytes_accessed=bytes_accessed),
    )(pooled_p, wb_t, bb_t, wh_t, bh_p)

    # combine the per-split partial sums (tiny: NSPLIT x b_pad x CLSNUM f32)
    return partials.sum(axis=0)[:B]


def init_params(key):
    """Deterministic init mimicking nn.Linear's U(-1/sqrt(fan_in), 1/sqrt(fan_in))."""
    k1, k2, k3, k4 = jax.random.split(key, 4)
    cin = 3 * S2D * S2D

    bound_b = 1.0 / jnp.sqrt(cin)
    wb = jax.random.uniform(k1, (cin, FEAT), jnp.float32, -bound_b, bound_b)
    bb = jax.random.uniform(k2, (1, FEAT), jnp.float32, -bound_b, bound_b)

    bound_h = 1.0 / jnp.sqrt(FEAT)
    wh = jax.random.uniform(k3, (FEAT, CLSNUM), jnp.float32, -bound_h, bound_h)
    bh = jax.random.uniform(k4, (1, CLSNUM), jnp.float32, -bound_h, bound_h)
    return wb, bb, wh, bh


if __name__ == "__main__":
    key = jax.random.PRNGKey(0)
    kx, kp = jax.random.split(key)

    # Small NCHW image batch consistent with in_chans=3 (H, W divisible by S2D).
    x = jax.random.normal(kx, (2, 3, 16, 16), jnp.float32)
    wb, bb, wh, bh = init_params(kp)

    # one-time weight prep (padding / bf16 cast / pre-tiling), cached & reused
    params = prepare_tres_params(wb, bb, wh, bh)
    params = jax.block_until_ready(params)

    out = tres_forward(x, params)
    out = jax.block_until_ready(out)

    # sanity: shape and finiteness
    assert out.shape == (2, CLSNUM)
    assert bool(jnp.all(jnp.isfinite(out)))

    print("KERNEL_OK")
</pallas_src>

<mosaic_0001>
module attributes {stable_mosaic.version = 11 : i64} {
  func.func @tres_head_kernel(%arg0: i32, %arg1: i32, %arg2: memref<8x48xbf16, #tpu.memory_space<vmem>>, %arg3: memref<1x48x2432xbf16, #tpu.memory_space<vmem>>, %arg4: memref<1x1x2432xf32, #tpu.memory_space<vmem>>, %arg5: memref<1x2432x128xbf16, #tpu.memory_space<vmem>>, %arg6: memref<1x128xf32, #tpu.memory_space<vmem>>, %arg7: memref<1x8x128xf32, #tpu.memory_space<vmem>>) attributes {dimension_semantics = [#tpu.dimension_semantics<parallel>, #tpu.dimension_semantics<arbitrary>], iteration_bounds = array<i64: 2, 2>, scalar_prefetch = 0 : i64, scratch_operands = 0 : i64, tpu.core_type = #tpu.core_type<tc>, window_params = [{pipeline_mode = #tpu.pipeline_mode<synchronous>, transform_indices = @transform_0, window_bounds = array<i64: 8, 48>}, {transform_indices = @transform_1, window_bounds = array<i64: 1, 48, 2432>}, {transform_indices = @transform_2, window_bounds = array<i64: 1, 1, 2432>}, {transform_indices = @transform_3, window_bounds = array<i64: 1, 2432, 128>}, {pipeline_mode = #tpu.pipeline_mode<synchronous>, transform_indices = @transform_4, window_bounds = array<i64: 1, 128>}, {transform_indices = @transform_5, window_bounds = array<i64: 1, 8, 128>}]} {
    %c0_i32 = arith.constant 0 : i32
    %0 = arith.cmpi eq, %arg1, %c0_i32 : i32
    %1 = arith.extui %0 : i1 to i32
    %c0_i32_0 = arith.constant 0 : i32
    %2 = arith.cmpi ne, %1, %c0_i32_0 : i32
    scf.if %2 {
      %cst_21 = arith.constant 0.000000e+00 : f32
      %28 = vector.broadcast %cst_21 : f32 to vector<8x128xf32>
      %c0_22 = arith.constant 0 : index
      %c0_23 = arith.constant 0 : index
      %c0_24 = arith.constant 0 : index
      %29 = vector.load %arg7[%c0_22, %c0_23, %c0_24] : memref<1x8x128xf32, #tpu.memory_space<vmem>>, vector<1x8x128xf32>
      %30 = vector.shape_cast %29 : vector<1x8x128xf32> to vector<8x128xf32>
      %31 = vector.shape_cast %28 : vector<8x128xf32> to vector<1x8x128xf32>
      tpu.vector_store %arg7[%c0_22, %c0_23, %c0_24], %31 {strides = array<i32>} : memref<1x8x128xf32, #tpu.memory_space<vmem>>, vector<1x8x128xf32>,
    } else {
    }
    %c0 = arith.constant 0 : index
    %c0_1 = arith.constant 0 : index
    %3 = vector.load %arg2[%c0, %c0_1] : memref<8x48xbf16, #tpu.memory_space<vmem>>, vector<8x48xbf16>
    %c0_2 = arith.constant 0 : index
    %c0_3 = arith.constant 0 : index
    %c0_4 = arith.constant 0 : index
    %4 = vector.load %arg3[%c0_2, %c0_3, %c0_4] : memref<1x48x2432xbf16, #tpu.memory_space<vmem>>, vector<1x48x2432xbf16>
    %5 = vector.shape_cast %4 : vector<1x48x2432xbf16> to vector<48x2432xbf16>
    %cst = arith.constant dense<0.000000e+00> : vector<8x2432xf32>
    %6 = tpu.matmul %3, %5, %cst {dimension_numbers = #tpu.dot_dimension_numbers<[1], [0], [0], [1], [0, 0, 1, 1], [], []>} : vector<8x48xbf16>, vector<48x2432xbf16>, vector<8x2432xf32> -> vector<8x2432xf32>
    %c0_5 = arith.constant 0 : index
    %c0_6 = arith.constant 0 : index
    %c0_7 = arith.constant 0 : index
    %7 = vector.load %arg4[%c0_5, %c0_6, %c0_7] : memref<1x1x2432xf32, #tpu.memory_space<vmem>>, vector<1x1x2432xf32>
    %8 = vector.shape_cast %7 : vector<1x1x2432xf32> to vector<1x2432xf32>
    %9 = vector.broadcast %8 : vector<1x2432xf32> to vector<8x2432xf32>
    %10 = arith.addf %6, %9 : vector<8x2432xf32>
    %cst_8 = arith.constant 0.000000e+00 : f32
    %11 = vector.broadcast %cst_8 : f32 to vector<8x2432xf32>
    %12 = arith.maximumf %10, %11 : vector<8x2432xf32>
    %13 = arith.truncf %12 : vector<8x2432xf32> to vector<8x2432xbf16>
    %c0_9 = arith.constant 0 : index
    %c0_10 = arith.constant 0 : index
    %c0_11 = arith.constant 0 : index
    %14 = vector.load %arg7[%c0_9, %c0_10, %c0_11] : memref<1x8x128xf32, #tpu.memory_space<vmem>>, vector<1x8x128xf32>
    %15 = vector.shape_cast %14 : vector<1x8x128xf32> to vector<8x128xf32>
    %c0_12 = arith.constant 0 : index
    %c0_13 = arith.constant 0 : index
    %c0_14 = arith.constant 0 : index
    %16 = vector.load %arg5[%c0_12, %c0_13, %c0_14] : memref<1x2432x128xbf16, #tpu.memory_space<vmem>>, vector<1x2432x128xbf16>
    %17 = vector.shape_cast %16 : vector<1x2432x128xbf16> to vector<2432x128xbf16>
    %cst_15 = arith.constant dense<0.000000e+00> : vector<8x128xf32>
    %18 = tpu.matmul %13, %17, %cst_15 {dimension_numbers = #tpu.dot_dimension_numbers<[1], [0], [0], [1], [0, 0, 1, 1], [], []>} : vector<8x2432xbf16>, vector<2432x128xbf16>, vector<8x128xf32> -> vector<8x128xf32>
    %19 = arith.addf %15, %18 : vector<8x128xf32>
    %c0_16 = arith.constant 0 : index
    %c0_17 = arith.constant 0 : index
    %c0_18 = arith.constant 0 : index
    %20 = vector.load %arg7[%c0_16, %c0_17, %c0_18] : memref<1x8x128xf32, #tpu.memory_space<vmem>>, vector<1x8x128xf32>
    %21 = vector.shape_cast %20 : vector<1x8x128xf32> to vector<8x128xf32>
    %22 = vector.shape_cast %19 : vector<8x128xf32> to vector<1x8x128xf32>
    tpu.vector_store %arg7[%c0_16, %c0_17, %c0_18], %22 {strides = array<i32>} : memref<1x8x128xf32, #tpu.memory_space<vmem>>, vector<1x8x128xf32>,
    %c1_i32 = arith.constant 1 : i32
    %23 = arith.cmpi eq, %arg1, %c1_i32 : i32
    %c0_i32_19 = arith.constant 0 : i32
    %24 = arith.cmpi eq, %arg0, %c0_i32_19 : i32
    %25 = arith.andi %23, %24 : i1
    %26 = arith.extui %25 : i1 to i32
    %c0_i32_20 = arith.constant 0 : i32
    %27 = arith.cmpi ne, %26, %c0_i32_20 : i32
    scf.if %27 {
      %c0_21 = arith.constant 0 : index
      %c0_22 = arith.constant 0 : index
      %c0_23 = arith.constant 0 : index
      %28 = vector.load %arg7[%c0_21, %c0_22, %c0_23] : memref<1x8x128xf32, #tpu.memory_space<vmem>>, vector<1x8x128xf32>
      %29 = vector.shape_cast %28 : vector<1x8x128xf32> to vector<8x128xf32>
      %c0_24 = arith.constant 0 : index
      %c0_25 = arith.constant 0 : index
      %30 = vector.load %arg6[%c0_24, %c0_25] : memref<1x128xf32, #tpu.memory_space<vmem>>, vector<1x128xf32>
      %31 = vector.broadcast %30 : vector<1x128xf32> to vector<8x128xf32>
      %32 = arith.addf %29, %31 : vector<8x128xf32>
      %c0_26 = arith.constant 0 : index
      %c0_27 = arith.constant 0 : index
      %c0_28 = arith.constant 0 : index
      %33 = vector.load %arg7[%c0_26, %c0_27, %c0_28] : memref<1x8x128xf32, #tpu.memory_space<vmem>>, vector<1x8x128xf32>
      %34 = vector.shape_cast %33 : vector<1x8x128xf32> to vector<8x128xf32>
      %35 = vector.shape_cast %32 : vector<8x128xf32> to vector<1x8x128xf32>
      tpu.vector_store %arg7[%c0_26, %c0_27, %c0_28], %35 {strides = array<i32>} : memref<1x8x128xf32, #tpu.memory_space<vmem>>, vector<1x8x128xf32>,
    } else {
    }
    return
  }
  func.func @transform_0(%arg0: i32, %arg1: i32) -> (i32, i32) {
    %c0_i32 = arith.constant 0 : i32
    %c0_i32_0 = arith.constant 0 : i32
    %c0_i32_1 = arith.constant 0 : i32
    return %c0_i32, %c0_i32_0 : i32, i32
  }
  func.func @transform_1(%arg0: i32, %arg1: i32) -> (i32, i32, i32) {
    %c2_i32 = arith.constant 2 : i32
    %0 = arith.muli %arg0, %c2_i32 : i32
    %1 = arith.addi %0, %arg1 : i32
    %c0_i32 = arith.constant 0 : i32
    %c0_i32_0 = arith.constant 0 : i32
    %c0_i32_1 = arith.constant 0 : i32
    return %1, %c0_i32, %c0_i32_0 : i32, i32, i32
  }
  func.func @transform_2(%arg0: i32, %arg1: i32) -> (i32, i32, i32) {
    %c2_i32 = arith.constant 2 : i32
    %0 = arith.muli %arg0, %c2_i32 : i32
    %1 = arith.addi %0, %arg1 : i32
    %c0_i32 = arith.constant 0 : i32
    %c0_i32_0 = arith.constant 0 : i32
    %c0_i32_1 = arith.constant 0 : i32
    return %1, %c0_i32, %c0_i32_0 : i32, i32, i32
  }
  func.func @transform_3(%arg0: i32, %arg1: i32) -> (i32, i32, i32) {
    %c2_i32 = arith.constant 2 : i32
    %0 = arith.muli %arg0, %c2_i32 : i32
    %1 = arith.addi %0, %arg1 : i32
    %c0_i32 = arith.constant 0 : i32
    %c0_i32_0 = arith.constant 0 : i32
    %c0_i32_1 = arith.constant 0 : i32
    return %1, %c0_i32, %c0_i32_0 : i32, i32, i32
  }
  func.func @transform_4(%arg0: i32, %arg1: i32) -> (i32, i32) {
    %c0_i32 = arith.constant 0 : i32
    %c0_i32_0 = arith.constant 0 : i32
    %c0_i32_1 = arith.constant 0 : i32
    return %c0_i32, %c0_i32_0 : i32, i32
  }
  func.func @transform_5(%arg0: i32, %arg1: i32) -> (i32, i32, i32) {
    %c0_i32 = arith.constant 0 : i32
    %c0_i32_0 = arith.constant 0 : i32
    %c0_i32_1 = arith.constant 0 : i32
    return %arg0, %c0_i32, %c0_i32_0 : i32, i32, i32
  }
}

</mosaic_0001>

<llo_original>
// kernel: tres_forward.1
$region0: #{tres_forward.1}
  #allocation0 [shape = 'u32[]', space=smem, size = 0x4, offset = 0x4, fixed_abs, tag = 'smem constant byte address 0x4 - core index']
  #allocation1 [shape = 'u32[72,128]{1,0:T(1,128)}', space=vmem, size = 0x9000, scoped, tag = 'internal scratch']
  %s0 = inlined_call_operand.vmem [shape: bf16[8,48], index: 0, kind: input, shape index: {}]
  %s1 = inlined_call_operand.hbm [shape: bf16[4,48,2432], index: 1, kind: input, shape index: {}]
  %s2 = inlined_call_operand.hbm [shape: f32[4,1,2432], index: 2, kind: input, shape index: {}]
  %s3 = inlined_call_operand.hbm [shape: bf16[4,2432,128], index: 3, kind: input, shape index: {}]
  %s4 = inlined_call_operand.hbm [shape: f32[1,128], index: 4, kind: input, shape index: {}]
  %s5 = inlined_call_operand.vmem [shape: f32[2,8,128], index: 5, kind: output, shape index: {}]
  %s6 = sld [smem:[#allocation0]]
  $region77: #{tres_forward.1} parent=0
    _
  %s8 = ssub.s32 1, %s6
  %s9 = scalar_select 0, %s8, %s6
  $region1: #{tres_forward.1} parent=0
    #allocation2 [shape = 'u8[466944]{0}', space=vmem, size = 0x72000, scoped, tag = 'input window, operand 1']
    #allocation3 [shape = 's32[2]{0}', space=sflag, size = 0x8, scoped, tag = 'scoped memory for tres_forward.1']
    #allocation4 [shape = 'u8[19456]{0}', space=vmem, size = 0x4c00, scoped, tag = 'input window, operand 2']
    #allocation5 [shape = 's32[2]{0}', space=sflag, size = 0x8, scoped, tag = 'scoped memory for tres_forward.1']
    #allocation6 [shape = 'u8[1245184]{0}', space=vmem, size = 0x130000, scoped, tag = 'input window, operand 3']
    #allocation7 [shape = 'u8[512]{0}', space=vmem, size = 0x400, scoped, tag = 'input window, operand 4, single buffered']
    #allocation8 [shape = 's32[1]{0}', space=sflag, size = 0x4, scoped, tag = 'scoped memory for tres_forward.1']
    %10 = vsyncpa [#allocation3], 0
    %s11 = scalar_lea.sflag [#allocation3], 1
    %12 = vsyncpa %s11, 0
    %13 = vsyncpa [#allocation5], 0
    %s14 = scalar_lea.sflag [#allocation5], 1
    %15 = vsyncpa %s14, 0
    %16 = vsyncpa [#allocation8], 0
    loop: start=0, step=1, limit=6
    $region2: #{tres_forward.1} parent=1 // loop_pre_header
      _
    $region3: #{tres_forward.1} parent=1 // loop_header
      %s18 = sphi 0, %s22
      %p19 = scmp.ge.s32.totalorder %s18, 6
      %s25 = sphi 0, %s37
      %s26 = sphi 0, %s33
      %s27 = sphi 0, %s25
      %s28 = sphi 0, %s26
      %s29 = sphi 0, %s27
      %s30 = sphi 0, %s28
      %s38 = sphi 0, %s38
      %s40 = sphi 0, %s38
      %s41 = sphi 0, %s40
      %s55 = sphi 0, %s41
      %s65 = sphi 0, %s67
      %s68 = sphi 0, %s65
      %s69 = sphi 0, %s68
      %s85 = sphi 0, %s69
      %s95 = sphi 0, %s97
      %s98 = sphi 0, %s95
      %s99 = sphi 0, %s98
      %s115 = sphi 0, %s99
      %s125 = sphi 0, %s127
      %s128 = sphi 0, %s125
      %s129 = sphi 0, %s128
      %s145 = sphi 0, %s129
      %s149 = sphi 0, %s149
      %s151 = sphi 0, %s149
      %s152 = sphi 0, %s151
      %s166 = sphi 0, %s152
      %s172 = sphi 0, %s174
      %s175 = sphi 0, %s172
      %s176 = sphi 0, %s175
      %s192 = sphi 0, %s176
    $region4: #{tres_forward.1} parent=1 // loop_header_branch
      %21 = sbr.rel (%p19) target = $region8
    $region5: #{tres_forward.1} parent=1 // loop_body
      %s23 = ssub.s32 %s18, 1
      %s24 = ssub.s32 %s18, 2
      %s31 = sadd.s32 1, %s26
      %p32 = scmp.ge.s32.totalorder %s31, 2
      %s33 = scalar_select %p32, 0, %s31
      %s34 = sadd.s32 1, %s25
      %s35 = scalar_select %p32, %s34, %s25
      %p36 = scmp.ge.s32.totalorder %s35, 2
      %s37 = scalar_select %p36, 0, %s35
      %s39 = sadd.s32 %s38, 1
      %p42 = scmp.eq.s32.totalorder %s18, 3
      %p43 = scmp.ne.s32.totalorder %s38, %s40
      %p44 = scmp.eq.s32.totalorder %s18, 0
      %p45 = por %p43, %p44
      %p46 = scmp.ne.s32.totalorder %s38, %s40
      %p47 = scmp.eq.s32.totalorder %s23, 3
      %p48 = por %p46, %p47
      %p49 = scmp.ne.s32.totalorder %s40, %s41
      %p50 = scmp.eq.s32.totalorder %s23, 0
      %p51 = por %p49, %p50
      %p52 = scmp.ne.s32.totalorder %s40, %s41
      %p53 = scmp.eq.s32.totalorder %s24, 3
      %p54 = por %p52, %p53
      %p56 = scmp.ne.s32.totalorder %s41, %s55
      %p57 = scmp.eq.s32.totalorder %s24, 0
      %p58 = por %p56, %p57
      %s59 = smul.u32 %s25, 2
      %s60 = sadd.s32 %s59, %s26
      %s61 = smul.u32 %s37, 2
      %s62 = sadd.s32 %s61, %s33
      %s63 = ssub.s32 %s60, %s62
      %p64 = scmp.eq.s32.totalorder %s63, 0
      %s66 = sadd.s32 %s65, 1
      %s67 = scalar_select %p64, %s65, %s66
      %p70 = pneg %p64
      %p71 = scmp.eq.s32.totalorder %s18, 3
      %p72 = por %p70, %p71
      %p73 = scmp.ne.s32.totalorder %s65, %s68
      %p74 = scmp.eq.s32.totalorder %s18, 0
      %p75 = por %p73, %p74
      %p76 = scmp.ne.s32.totalorder %s65, %s68
      %p77 = scmp.eq.s32.totalorder %s23, 3
      %p78 = por %p76, %p77
      %p79 = scmp.ne.s32.totalorder %s68, %s69
      %p80 = scmp.eq.s32.totalorder %s23, 0
      %p81 = por %p79, %p80
      %p82 = scmp.ne.s32.totalorder %s68, %s69
      %p83 = scmp.eq.s32.totalorder %s24, 3
      %p84 = por %p82, %p83
      %p86 = scmp.ne.s32.totalorder %s69, %s85
      %p87 = scmp.eq.s32.totalorder %s24, 0
      %p88 = por %p86, %p87
      %s89 = smul.u32 %s25, 2
      %s90 = sadd.s32 %s89, %s26
      %s91 = smul.u32 %s37, 2
      %s92 = sadd.s32 %s91, %s33
      %s93 = ssub.s32 %s90, %s92
      %p94 = scmp.eq.s32.totalorder %s93, 0
      %s96 = sadd.s32 %s95, 1
      %s97 = scalar_select %p94, %s95, %s96
      %p100 = pneg %p94
      %p101 = scmp.eq.s32.totalorder %s18, 3
      %p102 = por %p100, %p101
      %p103 = scmp.ne.s32.totalorder %s95, %s98
      %p104 = scmp.eq.s32.totalorder %s18, 0
      %p105 = por %p103, %p104
      %p106 = scmp.ne.s32.totalorder %s95, %s98
      %p107 = scmp.eq.s32.totalorder %s23, 3
      %p108 = por %p106, %p107
      %p109 = scmp.ne.s32.totalorder %s98, %s99
      %p110 = scmp.eq.s32.totalorder %s23, 0
      %p111 = por %p109, %p110
      %p112 = scmp.ne.s32.totalorder %s98, %s99
      %p113 = scmp.eq.s32.totalorder %s24, 3
      %p114 = por %p112, %p113
      %p116 = scmp.ne.s32.totalorder %s99, %s115
      %p117 = scmp.eq.s32.totalorder %s24, 0
      %p118 = por %p116, %p117
      %s119 = smul.u32 %s25, 2
      %s120 = sadd.s32 %s119, %s26
      %s121 = smul.u32 %s37, 2
      %s122 = sadd.s32 %s121, %s33
      %s123 = ssub.s32 %s120, %s122
      %p124 = scmp.eq.s32.totalorder %s123, 0
      %s126 = sadd.s32 %s125, 1
      %s127 = scalar_select %p124, %s125, %s126
      %p130 = pneg %p124
      %p131 = scmp.eq.s32.totalorder %s18, 3
      %p132 = por %p130, %p131
      %p133 = scmp.ne.s32.totalorder %s125, %s128
      %p134 = scmp.eq.s32.totalorder %s18, 0
      %p135 = por %p133, %p134
      %p136 = scmp.ne.s32.totalorder %s125, %s128
      %p137 = scmp.eq.s32.totalorder %s23, 3
      %p138 = por %p136, %p137
      %p139 = scmp.ne.s32.totalorder %s128, %s129
      %p140 = scmp.eq.s32.totalorder %s23, 0
      %p141 = por %p139, %p140
      %p142 = scmp.ne.s32.totalorder %s128, %s129
      %p143 = scmp.eq.s32.totalorder %s24, 3
      %p144 = por %p142, %p143
      %p146 = scmp.ne.s32.totalorder %s129, %s145
      %p147 = scmp.eq.s32.totalorder %s24, 0
      %p148 = por %p146, %p147
      %s150 = sadd.s32 %s149, 1
      %p153 = scmp.eq.s32.totalorder %s18, 3
      %p154 = scmp.ne.s32.totalorder %s149, %s151
      %p155 = scmp.eq.s32.totalorder %s18, 0
      %p156 = por %p154, %p155
      %p157 = scmp.ne.s32.totalorder %s149, %s151
      %p158 = scmp.eq.s32.totalorder %s23, 3
      %p159 = por %p157, %p158
      %p160 = scmp.ne.s32.totalorder %s151, %s152
      %p161 = scmp.eq.s32.totalorder %s23, 0
      %p162 = por %p160, %p161
      %p163 = scmp.ne.s32.totalorder %s151, %s152
      %p164 = scmp.eq.s32.totalorder %s24, 3
      %p165 = por %p163, %p164
      %p167 = scmp.ne.s32.totalorder %s152, %s166
      %p168 = scmp.eq.s32.totalorder %s24, 0
      %p169 = por %p167, %p168
      %s170 = ssub.s32 %s25, %s37
      %p171 = scmp.eq.s32.totalorder %s170, 0
      %s173 = sadd.s32 %s172, 1
      %s174 = scalar_select %p171, %s172, %s173
      %p177 = pneg %p171
      %p178 = scmp.eq.s32.totalorder %s18, 3
      %p179 = por %p177, %p178
      %p180 = scmp.ne.s32.totalorder %s172, %s175
      %p181 = scmp.eq.s32.totalorder %s18, 0
      %p182 = por %p180, %p181
      %p183 = scmp.ne.s32.totalorder %s172, %s175
      %p184 = scmp.eq.s32.totalorder %s23, 3
      %p185 = por %p183, %p184
      %p186 = scmp.ne.s32.totalorder %s175, %s176
      %p187 = scmp.eq.s32.totalorder %s23, 0
      %p188 = por %p186, %p187
      %p189 = scmp.ne.s32.totalorder %s175, %s176
      %p190 = scmp.eq.s32.totalorder %s24, 3
      %p191 = por %p189, %p190
      %p193 = scmp.ne.s32.totalorder %s176, %s192
      %p194 = scmp.eq.s32.totalorder %s24, 0
      %p195 = por %p193, %p194
      %p196 = scmp.le.s32.totalorder 1, %s18
      %p197 = scmp.lt.s32.totalorder %s18, 5
      %p198 = pnand %p196, %p197
      %p199 = pneg %p198
      // Predicated region
      $region9: #{tres_forward.1} parent=5 // pred_check
        _
      $region10: #{tres_forward.1} parent=5 // pred_check_branch
        %201 = sbr.rel (%p198) target = $region12
      $region11: #{tres_forward.1} parent=5 // pred_region
        %s202 = ssub.s32 %s18, 1
        // Predicated region
        $region13: #{tres_forward.1} parent=11 // pred_check
          %p203 = pneg %p51
        $region14: #{tres_forward.1} parent=11 // pred_check_branch
          %205 = sbr.rel (%p203) target = $region16
        $region15: #{tres_forward.1} parent=11 // pred_region
          _
        $region16: #{tres_forward.1} parent=11 // pred_fallthru
          _
        // Predicated region
        $region17: #{tres_forward.1} parent=11 // pred_check
          %p206 = pneg %p162
        $region18: #{tres_forward.1} parent=11 // pred_check_branch
          %208 = sbr.rel (%p206) target = $region20
        $region19: #{tres_forward.1} parent=11 // pred_region
          %210 = vsyncadd [#allocation8], 0
          %s212 = sshll.u32 %s4, 4
          %s213 = int_to_ptr.hbm [resolvable:$true] %s212
          %s214 = sshll.u32 [#allocation7], 4
          %s215 = int_to_ptr.vmem [resolvable:$true] %s214
          %217 = dma.hbm_to_vmem [thread:$0]  %s213, 16, %s215, [#allocation8]
        $region20: #{tres_forward.1} parent=11 // pred_fallthru
          _
      $region12: #{tres_forward.1} parent=5 // pred_fallthru
        _
      %p218 = scmp.lt.s32.totalorder %s18, 4
      // Predicated region
      $region21: #{tres_forward.1} parent=5 // pred_check
        %p219 = pneg %p218
      $region22: #{tres_forward.1} parent=5 // pred_check_branch
        %221 = sbr.rel (%p219) target = $region24
      $region23: #{tres_forward.1} parent=5 // pred_region
        // Predicated region
        $region25: #{tres_forward.1} parent=23 // pred_check
          %p222 = pneg %p75
        $region26: #{tres_forward.1} parent=23 // pred_check_branch
          %224 = sbr.rel (%p222) target = $region28
        $region27: #{tres_forward.1} parent=23 // pred_region
          %s225 = sand.u32 %s65, 1
          %s226 = scalar_lea.sflag [#allocation3], %s225
          %s227 = sand.u32 %s65, 1
          %s228 = smul.addr %s227, 456
          %s229 = scalar_lea.vmem [#allocation2], %s228
          %s230 = smul.u32 %s25, 2
          %s231 = sadd.s32 %s230, %s26
          %233 = vsyncadd %s226, 0
          %s234 = smul.addr %s231, 114
          %s235 = smul.addr %s234, 4
          %s236 = scalar_lea.hbm %s1, %s235
          %s237 = sshll.u32 %s236, 4
          %s238 = int_to_ptr.hbm [resolvable:$true] %s237
          %s239 = sshll.u32 %s229, 4
          %s240 = int_to_ptr.vmem [resolvable:$true] %s239
          %245 = dma.hbm_to_vmem [thread:$0]  %s238, 7296, %s240, %s226, 1216, 1216, 76
        $region28: #{tres_forward.1} parent=23 // pred_fallthru
          _
        // Predicated region
        $region29: #{tres_forward.1} parent=23 // pred_check
          %p246 = pneg %p105
        $region30: #{tres_forward.1} parent=23 // pred_check_branch
          %248 = sbr.rel (%p246) target = $region32
        $region31: #{tres_forward.1} parent=23 // pred_region
          %s249 = sand.u32 %s18, 1
          %s250 = scalar_lea.sflag [#allocation5], %s249
          %s251 = sand.u32 %s95, 1
          %s252 = smul.addr %s251, 19
          %s253 = scalar_lea.vmem [#allocation4], %s252
          %s254 = smul.u32 %s25, 2
          %s255 = sadd.s32 %s254, %s26
          %257 = vsyncadd %s250, 0
          %s258 = smul.addr %s255, 19
          %s259 = scalar_lea.hbm %s2, %s258
          %s261 = sshll.u32 %s259, 4
          %s262 = int_to_ptr.hbm [resolvable:$true] %s261
          %s263 = sshll.u32 %s253, 4
          %s264 = int_to_ptr.vmem [resolvable:$true] %s263
          %266 = dma.hbm_to_vmem [thread:$0]  %s262, 304, %s264, %s250
        $region32: #{tres_forward.1} parent=23 // pred_fallthru
          _
        // Predicated region
        $region33: #{tres_forward.1} parent=23 // pred_check
          %p267 = pneg %p135
        $region34: #{tres_forward.1} parent=23 // pred_check_branch
          %269 = sbr.rel (%p267) target = $region36
        $region35: #{tres_forward.1} parent=23 // pred_region
          %s270 = sand.u32 %s18, 1
          %s271 = scalar_lea.sflag [#allocation5], %s270
          %s272 = sand.u32 %s125, 1
          %s273 = smul.addr %s272, 1216
          %s274 = scalar_lea.vmem [#allocation6], %s273
          %s275 = smul.u32 %s25, 2
          %s276 = sadd.s32 %s275, %s26
          %278 = vsyncadd %s271, 0
          %s279 = smul.addr %s276, 304
          %s280 = smul.addr %s279, 4
          %s281 = scalar_lea.hbm %s3, %s280
          %s282 = sshll.u32 %s281, 4
          %s283 = int_to_ptr.hbm [resolvable:$true] %s282
          %s284 = sshll.u32 %s274, 4
          %s285 = int_to_ptr.vmem [resolvable:$true] %s284
          %290 = dma.hbm_to_vmem [thread:$0]  %s283, 19456, %s285, %s271, 64, 64, 4
        $region36: #{tres_forward.1} parent=23 // pred_fallthru
          _
      $region24: #{tres_forward.1} parent=5 // pred_fallthru
        _
      %p291 = scmp.le.s32.totalorder 1, %s18
      %p292 = scmp.lt.s32.totalorder %s18, 5
      %p293 = pnand %p291, %p292
      %p294 = pneg %p293
      // Predicated region
      $region37: #{tres_forward.1} parent=5 // pred_check
        _
      $region38: #{tres_forward.1} parent=5 // pred_check_branch
        %296 = sbr.rel (%p293) target = $region40
      $region39: #{tres_forward.1} parent=5 // pred_region
        %s297 = ssub.s32 %s18, 1
        %s298 = sand.u32 %s68, 1
        %s299 = scalar_lea.sflag [#allocation3], %s298
        %s300 = sand.u32 %s68, 1
        %s301 = smul.addr %s300, 456
        %s302 = scalar_lea.vmem [#allocation2], %s301
        // Predicated region
        $region41: #{tres_forward.1} parent=39 // pred_check
          %p303 = pneg %p81
        $region42: #{tres_forward.1} parent=39 // pred_check_branch
          %305 = sbr.rel (%p303) target = $region44
        $region43: #{tres_forward.1} parent=39 // pred_region
          %307 = dma.done %s299, 7296
        $region44: #{tres_forward.1} parent=39 // pred_fallthru
          _
        %s308 = sand.u32 %s23, 1
        %s309 = scalar_lea.sflag [#allocation5], %s308
        %s310 = sand.u32 %s98, 1
        %s311 = smul.addr %s310, 19
        %s312 = scalar_lea.vmem [#allocation4], %s311
        // Predicated region
        $region45: #{tres_forward.1} parent=39 // pred_check
          %p313 = pneg %p111
        $region46: #{tres_forward.1} parent=39 // pred_check_branch
          %315 = sbr.rel (%p313) target = $region48
        $region47: #{tres_forward.1} parent=39 // pred_region
          %317 = dma.done %s309, 304
        $region48: #{tres_forward.1} parent=39 // pred_fallthru
          _
        %s318 = sand.u32 %s23, 1
        %s319 = scalar_lea.sflag [#allocation5], %s318
        %s320 = sand.u32 %s128, 1
        %s321 = smul.addr %s320, 1216
        %s322 = scalar_lea.vmem [#allocation6], %s321
        // Predicated region
        $region49: #{tres_forward.1} parent=39 // pred_check
          %p323 = pneg %p141
        $region50: #{tres_forward.1} parent=39 // pred_check_branch
          %325 = sbr.rel (%p323) target = $region52
        $region51: #{tres_forward.1} parent=39 // pred_region
          %327 = dma.done %s319, 19456
        $region52: #{tres_forward.1} parent=39 // pred_fallthru
          _
        // Predicated region
        $region53: #{tres_forward.1} parent=39 // pred_check
          %p328 = pneg %p162
        $region54: #{tres_forward.1} parent=39 // pred_check_branch
          %330 = sbr.rel (%p328) target = $region56
        $region55: #{tres_forward.1} parent=39 // pred_region
          %332 = dma.done [#allocation8], 16
        $region56: #{tres_forward.1} parent=39 // pred_fallthru
          _
        %p333 = pneg %p51
        %p334 = pneg %p48
        %s335 = sand.u32 %s68, 1
        %s336 = scalar_lea.sflag [#allocation3], %s335
        %s337 = sand.u32 %s68, 1
        %s338 = smul.addr %s337, 456
        %s339 = scalar_lea.vmem [#allocation2], %s338
        %p340 = pneg %p81
        %p341 = pneg %p78
        %s342 = sand.u32 %s23, 1
        %s343 = scalar_lea.sflag [#allocation5], %s342
        %s344 = sand.u32 %s98, 1
        %s345 = smul.addr %s344, 19
        %s346 = scalar_lea.vmem [#allocation4], %s345
        %p347 = pneg %p111
        %p348 = pneg %p108
        %s349 = sand.u32 %s23, 1
        %s350 = scalar_lea.sflag [#allocation5], %s349
        %s351 = sand.u32 %s128, 1
        %s352 = smul.addr %s351, 1216
        %s353 = scalar_lea.vmem [#allocation6], %s352
        %p354 = pneg %p141
        %p355 = pneg %p138
        %p356 = pneg %p162
        %p357 = pneg %p159
        %p358 = pneg %p188
        %p359 = pneg %p185
        %p360 = scmp.lt.s32.totalorder %s27, 1
        %s361 = scalar_select %p360, %s27, 1
        %s362 = smul.addr %s361, 8
        %s363 = scalar_lea.vmem %s5, %s362
        %s364 = smul.u32 %s27, 2
        %s365 = sadd.s32 %s364, %s28
        %s366 = smul.u32 %s27, 2
        %s367 = sadd.s32 %s366, %s28
        %s368 = smul.u32 %s27, 2
        %s369 = sadd.s32 %s368, %s28
        %p370 = scmp.lt.s32.totalorder %s27, 1
        %s371 = scalar_select %p370, %s27, 1
        %s372 = smul.addr %s371, 8
        %s373 = scalar_lea.vmem %s5, %s372
        %p375 = scmp.eq.s32.totalorder %s28, 0
        // Predicated region
        $region57: #{tres_forward.1} parent=39 // pred_check
          %p376 = pneg %p375
        $region58: #{tres_forward.1} parent=39 // pred_check_branch
          %378 = sbr.rel (%p376) target = $region60
        $region59: #{tres_forward.1} parent=39 // pred_region
          %379 = vst [vmem:[%s373] sm:$0xff] 0.0
        $region60: #{tres_forward.1} parent=39 // pred_fallthru
          _
        %v380 = vld [vmem:[%s0] sm:$0xf]
        %v381 = vld [vmem:[%s302] sm:$0xff]
        %v382 = vld [vmem:[%s302 + $0x8] sm:$0xff]
        %v383 = vld [vmem:[%s302 + $0x10] sm:$0xff]
        %v384 = vld [vmem:[%s302 + $0x18] sm:$0xff]
        %v385 = vld [vmem:[%s302 + $0x20] sm:$0xff]
        %v386 = vld [vmem:[%s302 + $0x28] sm:$0xff]
        %v387 = vld [vmem:[%s302 + $0x30] sm:$0xff]
        %v388 = vld [vmem:[%s302 + $0x38] sm:$0xff]
        %v389 = vld [vmem:[%s302 + $0x40] sm:$0xff]
        %v390 = vld [vmem:[%s302 + $0x48] sm:$0xf]
        %v391 = vld [vmem:[%s302 + $0x4c] sm:$0xff]
        %v392 = vld [vmem:[%s302 + $0x54] sm:$0xff]
        %v393 = vld [vmem:[%s302 + $0x5c] sm:$0xff]
        %v394 = vld [vmem:[%s302 + $0x64] sm:$0xff]
        %v395 = vld [vmem:[%s302 + $0x6c] sm:$0xff]
        %v396 = vld [vmem:[%s302 + $0x74] sm:$0xff]
        %v397 = vld [vmem:[%s302 + $0x7c] sm:$0xff]
        %v398 = vld [vmem:[%s302 + $0x84] sm:$0xff]
        %v399 = vld [vmem:[%s302 + $0x8c] sm:$0xff]
        %v400 = vld [vmem:[%s302 + $0x94] sm:$0xf]
        %v401 = vld [vmem:[%s302 + $0x98] sm:$0xff]
        %v402 = vld [vmem:[%s302 + $0xa0] sm:$0xff]
        %v403 = vld [vmem:[%s302 + $0xa8] sm:$0xff]
        %v404 = vld [vmem:[%s302 + $0xb0] sm:$0xff]
        %v405 = vld [vmem:[%s302 + $0xb8] sm:$0xff]
        %v406 = vld [vmem:[%s302 + $0xc0] sm:$0xff]
        %v407 = vld [vmem:[%s302 + $0xc8] sm:$0xff]
        %v408 = vld [vmem:[%s302 + $0xd0] sm:$0xff]
        %v409 = vld [vmem:[%s302 + $0xd8] sm:$0xff]
        %v410 = vld [vmem:[%s302 + $0xe0] sm:$0xf]
        %v411 = vld [vmem:[%s302 + $0xe4] sm:$0xff]
        %v412 = vld [vmem:[%s302 + $0xec] sm:$0xff]
        %v413 = vld [vmem:[%s302 + $0xf4] sm:$0xff]
        %v414 = vld [vmem:[%s302 + $0xfc] sm:$0xff]
        %v415 = vld [vmem:[%s302 + $0x104] sm:$0xff]
        %v416 = vld [vmem:[%s302 + $0x10c] sm:$0xff]
        %v417 = vld [vmem:[%s302 + $0x114] sm:$0xff]
        %v418 = vld [vmem:[%s302 + $0x11c] sm:$0xff]
        %v419 = vld [vmem:[%s302 + $0x124] sm:$0xff]
        %v420 = vld [vmem:[%s302 + $0x12c] sm:$0xf]
        %v421 = vld [vmem:[%s302 + $0x130] sm:$0xff]
        %v422 = vld [vmem:[%s302 + $0x138] sm:$0xff]
        %v423 = vld [vmem:[%s302 + $0x140] sm:$0xff]
        %v424 = vld [vmem:[%s302 + $0x148] sm:$0xff]
        %v425 = vld [vmem:[%s302 + $0x150] sm:$0xff]
        %v426 = vld [vmem:[%s302 + $0x158] sm:$0xff]
        %v427 = vld [vmem:[%s302 + $0x160] sm:$0xff]
        %v428 = vld [vmem:[%s302 + $0x168] sm:$0xff]
        %v429 = vld [vmem:[%s302 + $0x170] sm:$0xff]
        %v430 = vld [vmem:[%s302 + $0x178] sm:$0xf]
        %v431 = vld [vmem:[%s302 + $0x17c] sm:$0xff]
        %v432 = vld [vmem:[%s302 + $0x184] sm:$0xff]
        %v433 = vld [vmem:[%s302 + $0x18c] sm:$0xff]
        %v434 = vld [vmem:[%s302 + $0x194] sm:$0xff]
        %v435 = vld [vmem:[%s302 + $0x19c] sm:$0xff]
        %v436 = vld [vmem:[%s302 + $0x1a4] sm:$0xff]
        %v437 = vld [vmem:[%s302 + $0x1ac] sm:$0xff]
        %v438 = vld [vmem:[%s302 + $0x1b4] sm:$0xff]
        %v439 = vld [vmem:[%s302 + $0x1bc] sm:$0xff]
        %v440 = vld [vmem:[%s302 + $0x1c4] sm:$0xf]
        %v441 = vld [vmem:[%s312] sm:$0xff]
        %v442 = vld [vmem:[%s312 + $0x8] sm:$0xff]
        %v443 = vld [vmem:[%s312 + $0x10] sm:$0x7]
        %v447 = vperm.slane %v441, 0
        %v448 = vperm.slane %v441, 1
        %v449 = vperm.slane %v441, 2
        %v450 = vperm.slane %v441, 3
        %v451 = vperm.slane %v441, 4
        %v452 = vperm.slane %v441, 5
        %v453 = vperm.slane %v441, 6
        %v454 = vperm.slane %v441, 7
        %v455 = vperm.slane %v442, 0
        %v456 = vperm.slane %v442, 1
        %v457 = vperm.slane %v442, 2
        %v458 = vperm.slane %v442, 3
        %v459 = vperm.slane %v442, 4
        %v460 = vperm.slane %v442, 5
        %v461 = vperm.slane %v442, 6
        %v462 = vperm.slane %v442, 7
        %v463 = vperm.slane %v443, 0
        %v464 = vperm.slane %v443, 1
        %v465 = vperm.slane %v443, 2
        %v545 = vunpack.c.l.b16 %v381
        %v546 = vunpack.c.h.b16 %v381
        %v547 = vunpack.c.l.b16 %v382
        %v548 = vunpack.c.h.b16 %v382
        %v549 = vunpack.c.l.b16 %v383
        %v550 = vunpack.c.h.b16 %v383
        %v551 = vunpack.c.l.b16 %v384
        %v552 = vunpack.c.h.b16 %v384
        %v553 = vunpack.c.l.b16 %v385
        %v554 = vunpack.c.h.b16 %v385
        %v555 = vunpack.c.l.b16 %v386
        %v556 = vunpack.c.h.b16 %v386
        %v557 = vunpack.c.l.b16 %v387
        %v558 = vunpack.c.h.b16 %v387
        %v559 = vunpack.c.l.b16 %v388
        %v560 = vunpack.c.h.b16 %v388
        %v561 = vunpack.c.l.b16 %v389
        %v562 = vunpack.c.h.b16 %v389
        %v563 = vunpack.c.l.b16 %v390
        %v564 = vunpack.c.l.b16 %v391
        %v565 = vunpack.c.h.b16 %v391
        %v566 = vunpack.c.l.b16 %v392
        %v567 = vunpack.c.h.b16 %v392
        %v568 = vunpack.c.l.b16 %v393
        %v569 = vunpack.c.h.b16 %v393
        %v570 = vunpack.c.l.b16 %v394
        %v571 = vunpack.c.h.b16 %v394
        %v572 = vunpack.c.l.b16 %v395
        %v573 = vunpack.c.h.b16 %v395
        %v574 = vunpack.c.l.b16 %v396
        %v575 = vunpack.c.h.b16 %v396
        %v576 = vunpack.c.l.b16 %v397
        %v577 = vunpack.c.h.b16 %v397
        %v578 = vunpack.c.l.b16 %v398
        %v579 = vunpack.c.h.b16 %v398
        %v580 = vunpack.c.l.b16 %v399
        %v581 = vunpack.c.h.b16 %v399
        %v582 = vunpack.c.l.b16 %v400
        %v583 = vunpack.c.l.b16 %v401
        %v584 = vunpack.c.h.b16 %v401
        %v585 = vunpack.c.l.b16 %v402
        %v586 = vunpack.c.h.b16 %v402
        %v587 = vunpack.c.l.b16 %v403
        %v588 = vunpack.c.h.b16 %v403
        %v589 = vunpack.c.l.b16 %v404
        %v590 = vunpack.c.h.b16 %v404
        %v591 = vunpack.c.l.b16 %v405
        %v592 = vunpack.c.h.b16 %v405
        %v593 = vunpack.c.l.b16 %v406
        %v594 = vunpack.c.h.b16 %v406
        %v595 = vunpack.c.l.b16 %v407
        %v596 = vunpack.c.h.b16 %v407
        %v597 = vunpack.c.l.b16 %v408
        %v598 = vunpack.c.h.b16 %v408
        %v599 = vunpack.c.l.b16 %v409
        %v600 = vunpack.c.h.b16 %v409
        %v601 = vunpack.c.l.b16 %v410
        %v602 = vunpack.c.l.b16 %v411
        %v603 = vunpack.c.h.b16 %v411
        %v604 = vunpack.c.l.b16 %v412
        %v605 = vunpack.c.h.b16 %v412
        %v606 = vunpack.c.l.b16 %v413
        %v607 = vunpack.c.h.b16 %v413
        %v608 = vunpack.c.l.b16 %v414
        %v609 = vunpack.c.h.b16 %v414
        %v610 = vunpack.c.l.b16 %v415
        %v611 = vunpack.c.h.b16 %v415
        %v612 = vunpack.c.l.b16 %v416
        %v613 = vunpack.c.h.b16 %v416
        %v614 = vunpack.c.l.b16 %v417
        %v615 = vunpack.c.h.b16 %v417
        %v616 = vunpack.c.l.b16 %v418
        %v617 = vunpack.c.h.b16 %v418
        %v618 = vunpack.c.l.b16 %v419
        %v619 = vunpack.c.h.b16 %v419
        %v620 = vunpack.c.l.b16 %v420
        %v621 = vunpack.c.l.b16 %v421
        %v622 = vunpack.c.h.b16 %v421
        %v623 = vunpack.c.l.b16 %v422
        %v624 = vunpack.c.h.b16 %v422
        %v625 = vunpack.c.l.b16 %v423
        %v626 = vunpack.c.h.b16 %v423
        %v627 = vunpack.c.l.b16 %v424
        %v628 = vunpack.c.h.b16 %v424
        %v629 = vunpack.c.l.b16 %v425
        %v630 = vunpack.c.h.b16 %v425
        %v631 = vunpack.c.l.b16 %v426
        %v632 = vunpack.c.h.b16 %v426
        %v633 = vunpack.c.l.b16 %v427
        %v634 = vunpack.c.h.b16 %v427
        %v635 = vunpack.c.l.b16 %v428
        %v636 = vunpack.c.h.b16 %v428
        %v637 = vunpack.c.l.b16 %v429
        %v638 = vunpack.c.h.b16 %v429
        %v639 = vunpack.c.l.b16 %v430
        %v640 = vunpack.c.l.b16 %v431
        %v641 = vunpack.c.h.b16 %v431
        %v642 = vunpack.c.l.b16 %v432
        %v643 = vunpack.c.h.b16 %v432
        %v644 = vunpack.c.l.b16 %v433
        %v645 = vunpack.c.h.b16 %v433
        %v646 = vunpack.c.l.b16 %v434
        %v647 = vunpack.c.h.b16 %v434
        %v648 = vunpack.c.l.b16 %v435
        %v649 = vunpack.c.h.b16 %v435
        %v650 = vunpack.c.l.b16 %v436
        %v651 = vunpack.c.h.b16 %v436
        %v652 = vunpack.c.l.b16 %v437
        %v653 = vunpack.c.h.b16 %v437
        %v654 = vunpack.c.l.b16 %v438
        %v655 = vunpack.c.h.b16 %v438
        %v656 = vunpack.c.l.b16 %v439
        %v657 = vunpack.c.h.b16 %v439
        %v658 = vunpack.c.l.b16 %v440
        %v659 = vpack.c.b16 %v564, %v545
        %v660 = vpack.c.b16 %v565, %v546
        %v661 = vpack.c.b16 %v566, %v547
        %v662 = vpack.c.b16 %v567, %v548
        %v663 = vpack.c.b16 %v568, %v549
        %v664 = vpack.c.b16 %v569, %v550
        %v665 = vpack.c.b16 %v570, %v551
        %v666 = vpack.c.b16 %v571, %v552
        %v667 = vpack.c.b16 %v572, %v553
        %v668 = vpack.c.b16 %v573, %v554
        %v669 = vpack.c.b16 %v574, %v555
        %v670 = vpack.c.b16 %v575, %v556
        %v671 = vpack.c.b16 %v576, %v557
        %v672 = vpack.c.b16 %v577, %v558
        %v673 = vpack.c.b16 %v578, %v559
        %v674 = vpack.c.b16 %v579, %v560
        %v675 = vpack.c.b16 %v580, %v561
        %v676 = vpack.c.b16 %v581, %v562
        %v677 = vpack.c.b16 %v582, %v563
        %v678 = vpack.c.b16 %v602, %v583
        %v679 = vpack.c.b16 %v603, %v584
        %v680 = vpack.c.b16 %v604, %v585
        %v681 = vpack.c.b16 %v605, %v586
        %v682 = vpack.c.b16 %v606, %v587
        %v683 = vpack.c.b16 %v607, %v588
        %v684 = vpack.c.b16 %v608, %v589
        %v685 = vpack.c.b16 %v609, %v590
        %v686 = vpack.c.b16 %v610, %v591
        %v687 = vpack.c.b16 %v611, %v592
        %v688 = vpack.c.b16 %v612, %v593
        %v689 = vpack.c.b16 %v613, %v594
        %v690 = vpack.c.b16 %v614, %v595
        %v691 = vpack.c.b16 %v615, %v596
        %v692 = vpack.c.b16 %v616, %v597
        %v693 = vpack.c.b16 %v617, %v598
        %v694 = vpack.c.b16 %v618, %v599
        %v695 = vpack.c.b16 %v619, %v600
        %v696 = vpack.c.b16 %v620, %v601
        %v697 = vpack.c.b16 %v640, %v621
        %v698 = vpack.c.b16 %v641, %v622
        %v699 = vpack.c.b16 %v642, %v623
        %v700 = vpack.c.b16 %v643, %v624
        %v701 = vpack.c.b16 %v644, %v625
        %v702 = vpack.c.b16 %v645, %v626
        %v703 = vpack.c.b16 %v646, %v627
        %v704 = vpack.c.b16 %v647, %v628
        %v705 = vpack.c.b16 %v648, %v629
        %v706 = vpack.c.b16 %v649, %v630
        %v707 = vpack.c.b16 %v650, %v631
        %v708 = vpack.c.b16 %v651, %v632
        %v709 = vpack.c.b16 %v652, %v633
        %v710 = vpack.c.b16 %v653, %v634
        %v711 = vpack.c.b16 %v654, %v635
        %v712 = vpack.c.b16 %v655, %v636
        %v713 = vpack.c.b16 %v656, %v637
        %v714 = vpack.c.b16 %v657, %v638
        %v715 = vpack.c.b16 %v658, %v639
        %vm773 = vcmask 392192
        %v775 = vsel %vm773, %v380, 0
        %777 = vmatpush.bf16.msra.mxu0 0
        %778 = vmatpush.bf16.msra.mxu0 0
        %779 = vmatpush.bf16.msra.mxu0 0
        %780 = vmatpush.bf16.msra.mxu0 0
        %781 = vmatpush.bf16.msra.mxu0 0
        %782 = vmatpush.bf16.msra.mxu0 %v697
        %783 = vmatpush.bf16.msra.mxu0 %v678
        %784 = vmatpush.bf16.msra.mxu0 %v659
        %785 = vmatmul.bf16.gmra.mxu0 %v775
        %v786 = vpop.f32.mrf.mxu0
        %v787 = vadd.f32 %v447, %v786
        %v788 = vpop.f32.mrf.mxu0
        %789 = vdwg.mxu0
        %790 = vmatpush.bf16.msra.mxu0 0
        %791 = vmatpush.bf16.msra.mxu0 0
        %792 = vmatpush.bf16.msra.mxu0 0
        %793 = vmatpush.bf16.msra.mxu0 0
        %794 = vmatpush.bf16.msra.mxu0 0
        %795 = vmatpush.bf16.msra.mxu0 %v698
        %796 = vmatpush.bf16.msra.mxu0 %v679
        %797 = vmatpush.bf16.msra.mxu0 %v660
        %798 = vmatmul.bf16.gmra.mxu0 %v775
        %v799 = vpop.f32.mrf.mxu0
        %v800 = vadd.f32 %v448, %v799
        %v801 = vpop.f32.mrf.mxu0
        %802 = vdwg.mxu0
        %803 = vmatpush.bf16.msra.mxu0 0
        %804 = vmatpush.bf16.msra.mxu0 0
        %805 = vmatpush.bf16.msra.mxu0 0
        %806 = vmatpush.bf16.msra.mxu0 0
        %807 = vmatpush.bf16.msra.mxu0 0
        %808 = vmatpush.bf16.msra.mxu0 %v699
        %809 = vmatpush.bf16.msra.mxu0 %v680
        %810 = vmatpush.bf16.msra.mxu0 %v661
        %811 = vmatmul.bf16.gmra.mxu0 %v775
        %v812 = vpop.f32.mrf.mxu0
        %v813 = vadd.f32 %v449, %v812
        %v814 = vpop.f32.mrf.mxu0
        %815 = vdwg.mxu0
        %816 = vmatpush.bf16.msra.mxu0 0
        %817 = vmatpush.bf16.msra.mxu0 0
        %818 = vmatpush.bf16.msra.mxu0 0
        %819 = vmatpush.bf16.msra.mxu0 0
        %820 = vmatpush.bf16.msra.mxu0 0
        %821 = vmatpush.bf16.msra.mxu0 %v700
        %822 = vmatpush.bf16.msra.mxu0 %v681
        %823 = vmatpush.bf16.msra.mxu0 %v662
        %824 = vmatmul.bf16.gmra.mxu0 %v775
        %v825 = vpop.f32.mrf.mxu0
        %v826 = vadd.f32 %v450, %v825
        %v827 = vpop.f32.mrf.mxu0
        %828 = vdwg.mxu0
        %829 = vmatpush.bf16.msra.mxu0 0
        %830 = vmatpush.bf16.msra.mxu0 0
        %831 = vmatpush.bf16.msra.mxu0 0
        %832 = vmatpush.bf16.msra.mxu0 0
        %833 = vmatpush.bf16.msra.mxu0 0
        %834 = vmatpush.bf16.msra.mxu0 %v701
        %835 = vmatpush.bf16.msra.mxu0 %v682
        %836 = vmatpush.bf16.msra.mxu0 %v663
        %837 = vmatmul.bf16.gmra.mxu0 %v775
        %v838 = vpop.f32.mrf.mxu0
        %v839 = vadd.f32 %v451, %v838
        %v840 = vpop.f32.mrf.mxu0
        %841 = vdwg.mxu0
        %842 = vmatpush.bf16.msra.mxu0 0
        %843 = vmatpush.bf16.msra.mxu0 0
        %844 = vmatpush.bf16.msra.mxu0 0
        %845 = vmatpush.bf16.msra.mxu0 0
        %846 = vmatpush.bf16.msra.mxu0 0
        %847 = vmatpush.bf16.msra.mxu0 %v702
        %848 = vmatpush.bf16.msra.mxu0 %v683
        %849 = vmatpush.bf16.msra.mxu0 %v664
        %850 = vmatmul.bf16.gmra.mxu0 %v775
        %v851 = vpop.f32.mrf.mxu0
        %v852 = vadd.f32 %v452, %v851
        %v853 = vpop.f32.mrf.mxu0
        %854 = vdwg.mxu0
        %855 = vmatpush.bf16.msra.mxu0 0
        %856 = vmatpush.bf16.msra.mxu0 0
        %857 = vmatpush.bf16.msra.mxu0 0
        %858 = vmatpush.bf16.msra.mxu0 0
        %859 = vmatpush.bf16.msra.mxu0 0
        %860 = vmatpush.bf16.msra.mxu0 %v703
        %861 = vmatpush.bf16.msra.mxu0 %v684
        %862 = vmatpush.bf16.msra.mxu0 %v665
        %863 = vmatmul.bf16.gmra.mxu0 %v775
        %v864 = vpop.f32.mrf.mxu0
        %v865 = vadd.f32 %v453, %v864
        %v866 = vpop.f32.mrf.mxu0
        %867 = vdwg.mxu0
        %868 = vmatpush.bf16.msra.mxu0 0
        %869 = vmatpush.bf16.msra.mxu0 0
        %870 = vmatpush.bf16.msra.mxu0 0
        %871 = vmatpush.bf16.msra.mxu0 0
        %872 = vmatpush.bf16.msra.mxu0 0
        %873 = vmatpush.bf16.msra.mxu0 %v704
        %874 = vmatpush.bf16.msra.mxu0 %v685
        %875 = vmatpush.bf16.msra.mxu0 %v666
        %876 = vmatmul.bf16.gmra.mxu0 %v775
        %v877 = vpop.f32.mrf.mxu0
        %v878 = vadd.f32 %v454, %v877
        %v879 = vpop.f32.mrf.mxu0
        %880 = vdwg.mxu0
        %881 = vmatpush.bf16.msra.mxu0 0
        %882 = vmatpush.bf16.msra.mxu0 0
        %883 = vmatpush.bf16.msra.mxu0 0
        %884 = vmatpush.bf16.msra.mxu0 0
        %885 = vmatpush.bf16.msra.mxu0 0
        %886 = vmatpush.bf16.msra.mxu0 %v705
        %887 = vmatpush.bf16.msra.mxu0 %v686
        %888 = vmatpush.bf16.msra.mxu0 %v667
        %889 = vmatmul.bf16.gmra.mxu0 %v775
        %v890 = vpop.f32.mrf.mxu0
        %v891 = vadd.f32 %v455, %v890
        %v892 = vpop.f32.mrf.mxu0
        %893 = vdwg.mxu0
        %894 = vmatpush.bf16.msra.mxu0 0
        %895 = vmatpush.bf16.msra.mxu0 0
        %896 = vmatpush.bf16.msra.mxu0 0
        %897 = vmatpush.bf16.msra.mxu0 0
        %898 = vmatpush.bf16.msra.mxu0 0
        %899 = vmatpush.bf16.msra.mxu0 %v706
        %900 = vmatpush.bf16.msra.mxu0 %v687
        %901 = vmatpush.bf16.msra.mxu0 %v668
        %902 = vmatmul.bf16.gmra.mxu0 %v775
        %v903 = vpop.f32.mrf.mxu0
        %v904 = vadd.f32 %v456, %v903
        %v905 = vpop.f32.mrf.mxu0
        %906 = vdwg.mxu0
        %907 = vmatpush.bf16.msra.mxu0 0
        %908 = vmatpush.bf16.msra.mxu0 0
        %909 = vmatpush.bf16.msra.mxu0 0
        %910 = vmatpush.bf16.msra.mxu0 0
        %911 = vmatpush.bf16.msra.mxu0 0
        %912 = vmatpush.bf16.msra.mxu0 %v707
        %913 = vmatpush.bf16.msra.mxu0 %v688
        %914 = vmatpush.bf16.msra.mxu0 %v669
        %915 = vmatmul.bf16.gmra.mxu0 %v775
        %v916 = vpop.f32.mrf.mxu0
        %v917 = vadd.f32 %v457, %v916
        %v918 = vpop.f32.mrf.mxu0
        %919 = vdwg.mxu0
        %920 = vmatpush.bf16.msra.mxu0 0
        %921 = vmatpush.bf16.msra.mxu0 0
        %922 = vmatpush.bf16.msra.mxu0 0
        %923 = vmatpush.bf16.msra.mxu0 0
        %924 = vmatpush.bf16.msra.mxu0 0
        %925 = vmatpush.bf16.msra.mxu0 %v708
        %926 = vmatpush.bf16.msra.mxu0 %v689
        %927 = vmatpush.bf16.msra.mxu0 %v670
        %928 = vmatmul.bf16.gmra.mxu0 %v775
        %v929 = vpop.f32.mrf.mxu0
        %v930 = vadd.f32 %v458, %v929
        %v931 = vpop.f32.mrf.mxu0
        %932 = vdwg.mxu0
        %933 = vmatpush.bf16.msra.mxu0 0
        %934 = vmatpush.bf16.msra.mxu0 0
        %935 = vmatpush.bf16.msra.mxu0 0
        %936 = vmatpush.bf16.msra.mxu0 0
        %937 = vmatpush.bf16.msra.mxu0 0
        %938 = vmatpush.bf16.msra.mxu0 %v709
        %939 = vmatpush.bf16.msra.mxu0 %v690
        %940 = vmatpush.bf16.msra.mxu0 %v671
        %941 = vmatmul.bf16.gmra.mxu0 %v775
        %v942 = vpop.f32.mrf.mxu0
        %v943 = vadd.f32 %v459, %v942
        %v944 = vpop.f32.mrf.mxu0
        %945 = vdwg.mxu0
        %946 = vmatpush.bf16.msra.mxu0 0
        %947 = vmatpush.bf16.msra.mxu0 0
        %948 = vmatpush.bf16.msra.mxu0 0
        %949 = vmatpush.bf16.msra.mxu0 0
        %950 = vmatpush.bf16.msra.mxu0 0
        %951 = vmatpush.bf16.msra.mxu0 %v710
        %952 = vmatpush.bf16.msra.mxu0 %v691
        %953 = vmatpush.bf16.msra.mxu0 %v672
        %954 = vmatmul.bf16.gmra.mxu0 %v775
        %v955 = vpop.f32.mrf.mxu0
        %v956 = vadd.f32 %v460, %v955
        %v957 = vpop.f32.mrf.mxu0
        %958 = vdwg.mxu0
        %959 = vmatpush.bf16.msra.mxu0 0
        %960 = vmatpush.bf16.msra.mxu0 0
        %961 = vmatpush.bf16.msra.mxu0 0
        %962 = vmatpush.bf16.msra.mxu0 0
        %963 = vmatpush.bf16.msra.mxu0 0
        %964 = vmatpush.bf16.msra.mxu0 %v711
        %965 = vmatpush.bf16.msra.mxu0 %v692
        %966 = vmatpush.bf16.msra.mxu0 %v673
        %967 = vmatmul.bf16.gmra.mxu0 %v775
        %v968 = vpop.f32.mrf.mxu0
        %v969 = vadd.f32 %v461, %v968
        %v970 = vpop.f32.mrf.mxu0
        %971 = vdwg.mxu0
        %972 = vmatpush.bf16.msra.mxu0 0
        %973 = vmatpush.bf16.msra.mxu0 0
        %974 = vmatpush.bf16.msra.mxu0 0
        %975 = vmatpush.bf16.msra.mxu0 0
        %976 = vmatpush.bf16.msra.mxu0 0
        %977 = vmatpush.bf16.msra.mxu0 %v712
        %978 = vmatpush.bf16.msra.mxu0 %v693
        %979 = vmatpush.bf16.msra.mxu0 %v674
        %980 = vmatmul.bf16.gmra.mxu0 %v775
        %v981 = vpop.f32.mrf.mxu0
        %v982 = vadd.f32 %v462, %v981
        %v983 = vpop.f32.mrf.mxu0
        %984 = vdwg.mxu0
        %985 = vmatpush.bf16.msra.mxu0 0
        %986 = vmatpush.bf16.msra.mxu0 0
        %987 = vmatpush.bf16.msra.mxu0 0
        %988 = vmatpush.bf16.msra.mxu0 0
        %989 = vmatpush.bf16.msra.mxu0 0
        %990 = vmatpush.bf16.msra.mxu0 %v713
        %991 = vmatpush.bf16.msra.mxu0 %v694
        %992 = vmatpush.bf16.msra.mxu0 %v675
        %993 = vmatmul.bf16.gmra.mxu0 %v775
        %v994 = vpop.f32.mrf.mxu0
        %v995 = vadd.f32 %v463, %v994
        %v996 = vpop.f32.mrf.mxu0
        %997 = vdwg.mxu0
        %998 = vmatpush.bf16.msra.mxu0 0
        %999 = vmatpush.bf16.msra.mxu0 0
        %1000 = vmatpush.bf16.msra.mxu0 0
        %1001 = vmatpush.bf16.msra.mxu0 0
        %1002 = vmatpush.bf16.msra.mxu0 0
        %1003 = vmatpush.bf16.msra.mxu0 %v714
        %1004 = vmatpush.bf16.msra.mxu0 %v695
        %1005 = vmatpush.bf16.msra.mxu0 %v676
        %1006 = vmatmul.bf16.gmra.mxu0 %v775
        %v1007 = vpop.f32.mrf.mxu0
        %v1008 = vadd.f32 %v464, %v1007
        %v1009 = vpop.f32.mrf.mxu0
        %1010 = vdwg.mxu0
        %1011 = vmatpush.bf16.msra.mxu0 0
        %1012 = vmatpush.bf16.msra.mxu0 0
        %1013 = vmatpush.bf16.msra.mxu0 0
        %1014 = vmatpush.bf16.msra.mxu0 0
        %1015 = vmatpush.bf16.msra.mxu0 0
        %1016 = vmatpush.bf16.msra.mxu0 %v715
        %1017 = vmatpush.bf16.msra.mxu0 %v696
        %1018 = vmatpush.bf16.msra.mxu0 %v677
        %1019 = vmatmul.bf16.gmra.mxu0 %v775
        %v1020 = vpop.f32.mrf.mxu0
        %v1021 = vadd.f32 %v465, %v1020
        %v1022 = vpop.f32.mrf.mxu0
        %1023 = vdwg.mxu0
        %v1024 = vmax.f32 %v787, 0.0
        %v1025 = vmax.f32 %v800, 0.0
        %v1026 = vmax.f32 %v813, 0.0
        %v1027 = vmax.f32 %v826, 0.0
        %v1028 = vmax.f32 %v839, 0.0
        %v1029 = vmax.f32 %v852, 0.0
        %v1030 = vmax.f32 %v865, 0.0
        %v1031 = vmax.f32 %v878, 0.0
        %v1032 = vmax.f32 %v891, 0.0
        %v1033 = vmax.f32 %v904, 0.0
        %v1034 = vmax.f32 %v917, 0.0
        %v1035 = vmax.f32 %v930, 0.0
        %v1036 = vmax.f32 %v943, 0.0
        %v1037 = vmax.f32 %v956, 0.0
        %v1038 = vmax.f32 %v969, 0.0
        %v1039 = vmax.f32 %v982, 0.0
        %v1040 = vmax.f32 %v995, 0.0
        %v1041 = vmax.f32 %v1008, 0.0
        %v1042 = vmax.f32 %v1021, 0.0
        %v1043 = vpack.c.bf16 %v1024, %v1024
        %v1044 = vpack.c.bf16 %v1025, %v1025
        %v1045 = vpack.c.bf16 %v1026, %v1026
        %v1046 = vpack.c.bf16 %v1027, %v1027
        %v1047 = vpack.c.bf16 %v1028, %v1028
        %v1048 = vpack.c.bf16 %v1029, %v1029
        %v1049 = vpack.c.bf16 %v1030, %v1030
        %v1050 = vpack.c.bf16 %v1031, %v1031
        %v1051 = vpack.c.bf16 %v1032, %v1032
        %v1052 = vpack.c.bf16 %v1033, %v1033
        %v1053 = vpack.c.bf16 %v1034, %v1034
        %v1054 = vpack.c.bf16 %v1035, %v1035
        %v1055 = vpack.c.bf16 %v1036, %v1036
        %v1056 = vpack.c.bf16 %v1037, %v1037
        %v1057 = vpack.c.bf16 %v1038, %v1038
        %v1058 = vpack.c.bf16 %v1039, %v1039
        %v1059 = vpack.c.bf16 %v1040, %v1040
        %v1060 = vpack.c.bf16 %v1041, %v1041
        %v1061 = vpack.c.bf16 %v1042, %v1042
        %v1062 = vld [vmem:[%s373] sm:$0xff]
        %v1063 = vld [vmem:[%s322] sm:$0xf]
        %v1064 = vld [vmem:[%s322 + $0x4] sm:$0xf]
        %v1065 = vld [vmem:[%s322 + $0x8] sm:$0xf]
        %v1066 = vld [vmem:[%s322 + $0xc] sm:$0xf]
        %v1067 = vld [vmem:[%s322 + $0x10] sm:$0xf]
        %v1068 = vld [vmem:[%s322 + $0x14] sm:$0xf]
        %v1069 = vld [vmem:[%s322 + $0x18] sm:$0xf]
        %v1070 = vld [vmem:[%s322 + $0x1c] sm:$0xf]
        %v1071 = vld [vmem:[%s322 + $0x20] sm:$0xf]
        %v1072 = vld [vmem:[%s322 + $0x24] sm:$0xf]
        %v1073 = vld [vmem:[%s322 + $0x28] sm:$0xf]
        %v1074 = vld [vmem:[%s322 + $0x2c] sm:$0xf]
        %v1075 = vld [vmem:[%s322 + $0x30] sm:$0xf]
        %v1076 = vld [vmem:[%s322 + $0x34] sm:$0xf]
        %v1077 = vld [vmem:[%s322 + $0x38] sm:$0xf]
        %v1078 = vld [vmem:[%s322 + $0x3c] sm:$0xf]
        %v1079 = vld [vmem:[%s322 + $0x40] sm:$0xf]
        %v1080 = vld [vmem:[%s322 + $0x44] sm:$0xf]
        %v1081 = vld [vmem:[%s322 + $0x48] sm:$0xf]
        %v1082 = vld [vmem:[%s322 + $0x4c] sm:$0xf]
        %v1083 = vld [vmem:[%s322 + $0x50] sm:$0xf]
        %v1084 = vld [vmem:[%s322 + $0x54] sm:$0xf]
        %v1085 = vld [vmem:[%s322 + $0x58] sm:$0xf]
        %v1086 = vld [vmem:[%s322 + $0x5c] sm:$0xf]
        %v1087 = vld [vmem:[%s322 + $0x60] sm:$0xf]
        %v1088 = vld [vmem:[%s322 + $0x64] sm:$0xf]
        %v1089 = vld [vmem:[%s322 + $0x68] sm:$0xf]
        %v1090 = vld [vmem:[%s322 + $0x6c] sm:$0xf]
        %v1091 = vld [vmem:[%s322 + $0x70] sm:$0xf]
        %v1092 = vld [vmem:[%s322 + $0x74] sm:$0xf]
        %v1093 = vld [vmem:[%s322 + $0x78] sm:$0xf]
        %v1094 = vld [vmem:[%s322 + $0x7c] sm:$0xf]
        %v1095 = vld [vmem:[%s322 + $0x80] sm:$0xf]
        %v1096 = vld [vmem:[%s322 + $0x84] sm:$0xf]
        %v1097 = vld [vmem:[%s322 + $0x88] sm:$0xf]
        %v1098 = vld [vmem:[%s322 + $0x8c] sm:$0xf]
        %v1099 = vld [vmem:[%s322 + $0x90] sm:$0xf]
        %v1100 = vld [vmem:[%s322 + $0x94] sm:$0xf]
        %v1101 = vld [vmem:[%s322 + $0x98] sm:$0xf]
        %v1102 = vld [vmem:[%s322 + $0x9c] sm:$0xf]
        %v1103 = vld [vmem:[%s322 + $0xa0] sm:$0xf]
        %v1104 = vld [vmem:[%s322 + $0xa4] sm:$0xf]
        %v1105 = vld [vmem:[%s322 + $0xa8] sm:$0xf]
        %v1106 = vld [vmem:[%s322 + $0xac] sm:$0xf]
        %v1107 = vld [vmem:[%s322 + $0xb0] sm:$0xf]
        %v1108 = vld [vmem:[%s322 + $0xb4] sm:$0xf]
        %v1109 = vld [vmem:[%s322 + $0xb8] sm:$0xf]
        %v1110 = vld [vmem:[%s322 + $0xbc] sm:$0xf]
        %v1111 = vld [vmem:[%s322 + $0xc0] sm:$0xf]
        %v1112 = vld [vmem:[%s322 + $0xc4] sm:$0xf]
        %v1113 = vld [vmem:[%s322 + $0xc8] sm:$0xf]
        %v1114 = vld [vmem:[%s322 + $0xcc] sm:$0xf]
        %v1115 = vld [vmem:[%s322 + $0xd0] sm:$0xf]
        %v1116 = vld [vmem:[%s322 + $0xd4] sm:$0xf]
        %v1117 = vld [vmem:[%s322 + $0xd8] sm:$0xf]
        %v1118 = vld [vmem:[%s322 + $0xdc] sm:$0xf]
        %v1119 = vld [vmem:[%s322 + $0xe0] sm:$0xf]
        %v1120 = vld [vmem:[%s322 + $0xe4] sm:$0xf]
        %v1121 = vld [vmem:[%s322 + $0xe8] sm:$0xf]
        %v1122 = vld [vmem:[%s322 + $0xec] sm:$0xf]
        %v1123 = vld [vmem:[%s322 + $0xf0] sm:$0xf]
        %v1124 = vld [vmem:[%s322 + $0xf4] sm:$0xf]
        %v1125 = vld [vmem:[%s322 + $0xf8] sm:$0xf]
        %v1126 = vld [vmem:[%s322 + $0xfc] sm:$0xf]
        %v1127 = vld [vmem:[%s322 + $0x100] sm:$0xf]
        %v1128 = vld [vmem:[%s322 + $0x104] sm:$0xf]
        %v1129 = vld [vmem:[%s322 + $0x108] sm:$0xf]
        %v1130 = vld [vmem:[%s322 + $0x10c] sm:$0xf]
        %v1131 = vld [vmem:[%s322 + $0x110] sm:$0xf]
        %v1132 = vld [vmem:[%s322 + $0x114] sm:$0xf]
        %v1133 = vld [vmem:[%s322 + $0x118] sm:$0xf]
        %v1134 = vld [vmem:[%s322 + $0x11c] sm:$0xf]
        %v1135 = vld [vmem:[%s322 + $0x120] sm:$0xf]
        %v1136 = vld [vmem:[%s322 + $0x124] sm:$0xf]
        %v1137 = vld [vmem:[%s322 + $0x128] sm:$0xf]
        %v1138 = vld [vmem:[%s322 + $0x12c] sm:$0xf]
        %v1139 = vld [vmem:[%s322 + $0x130] sm:$0xf]
        %v1140 = vld [vmem:[%s322 + $0x134] sm:$0xf]
        %v1141 = vld [vmem:[%s322 + $0x138] sm:$0xf]
        %v1142 = vld [vmem:[%s322 + $0x13c] sm:$0xf]
        %v1143 = vld [vmem:[%s322 + $0x140] sm:$0xf]
        %v1144 = vld [vmem:[%s322 + $0x144] sm:$0xf]
        %v1145 = vld [vmem:[%s322 + $0x148] sm:$0xf]
        %v1146 = vld [vmem:[%s322 + $0x14c] sm:$0xf]
        %v1147 = vld [vmem:[%s322 + $0x150] sm:$0xf]
        %v1148 = vld [vmem:[%s322 + $0x154] sm:$0xf]
        %v1149 = vld [vmem:[%s322 + $0x158] sm:$0xf]
        %v1150 = vld [vmem:[%s322 + $0x15c] sm:$0xf]
        %v1151 = vld [vmem:[%s322 + $0x160] sm:$0xf]
        %v1152 = vld [vmem:[%s322 + $0x164] sm:$0xf]
        %v1153 = vld [vmem:[%s322 + $0x168] sm:$0xf]
        %v1154 = vld [vmem:[%s322 + $0x16c] sm:$0xf]
        %v1155 = vld [vmem:[%s322 + $0x170] sm:$0xf]
        %v1156 = vld [vmem:[%s322 + $0x174] sm:$0xf]
        %v1157 = vld [vmem:[%s322 + $0x178] sm:$0xf]
        %v1158 = vld [vmem:[%s322 + $0x17c] sm:$0xf]
        %v1159 = vld [vmem:[%s322 + $0x180] sm:$0xf]
        %v1160 = vld [vmem:[%s322 + $0x184] sm:$0xf]
        %v1161 = vld [vmem:[%s322 + $0x188] sm:$0xf]
        %v1162 = vld [vmem:[%s322 + $0x18c] sm:$0xf]
        %v1163 = vld [vmem:[%s322 + $0x190] sm:$0xf]
        %v1164 = vld [vmem:[%s322 + $0x194] sm:$0xf]
        %v1165 = vld [vmem:[%s322 + $0x198] sm:$0xf]
        %v1166 = vld [vmem:[%s322 + $0x19c] sm:$0xf]
        %v1167 = vld [vmem:[%s322 + $0x1a0] sm:$0xf]
        %v1168 = vld [vmem:[%s322 + $0x1a4] sm:$0xf]
        %v1169 = vld [vmem:[%s322 + $0x1a8] sm:$0xf]
        %v1170 = vld [vmem:[%s322 + $0x1ac] sm:$0xf]
        %v1171 = vld [vmem:[%s322 + $0x1b0] sm:$0xf]
        %v1172 = vld [vmem:[%s322 + $0x1b4] sm:$0xf]
        %v1173 = vld [vmem:[%s322 + $0x1b8] sm:$0xf]
        %v1174 = vld [vmem:[%s322 + $0x1bc] sm:$0xf]
        %v1175 = vld [vmem:[%s322 + $0x1c0] sm:$0xf]
        %v1176 = vld [vmem:[%s322 + $0x1c4] sm:$0xf]
        %v1177 = vld [vmem:[%s322 + $0x1c8] sm:$0xf]
        %v1178 = vld [vmem:[%s322 + $0x1cc] sm:$0xf]
        %v1179 = vld [vmem:[%s322 + $0x1d0] sm:$0xf]
        %v1180 = vld [vmem:[%s322 + $0x1d4] sm:$0xf]
        %v1181 = vld [vmem:[%s322 + $0x1d8] sm:$0xf]
        %v1182 = vld [vmem:[%s322 + $0x1dc] sm:$0xf]
        %v1183 = vld [vmem:[%s322 + $0x1e0] sm:$0xf]
        %v1184 = vld [vmem:[%s322 + $0x1e4] sm:$0xf]
        %v1185 = vld [vmem:[%s322 + $0x1e8] sm:$0xf]
        %v1186 = vld [vmem:[%s322 + $0x1ec] sm:$0xf]
        %v1187 = vld [vmem:[%s322 + $0x1f0] sm:$0xf]
        %v1188 = vld [vmem:[%s322 + $0x1f4] sm:$0xf]
        %v1189 = vld [vmem:[%s322 + $0x1f8] sm:$0xf]
        %v1190 = vld [vmem:[%s322 + $0x1fc] sm:$0xf]
        %v1191 = vld [vmem:[%s322 + $0x200] sm:$0xf]
        %v1192 = vld [vmem:[%s322 + $0x204] sm:$0xf]
        %v1193 = vld [vmem:[%s322 + $0x208] sm:$0xf]
        %v1194 = vld [vmem:[%s322 + $0x20c] sm:$0xf]
        %v1195 = vld [vmem:[%s322 + $0x210] sm:$0xf]
        %v1196 = vld [vmem:[%s322 + $0x214] sm:$0xf]
        %v1197 = vld [vmem:[%s322 + $0x218] sm:$0xf]
        %v1198 = vld [vmem:[%s322 + $0x21c] sm:$0xf]
        %v1199 = vld [vmem:[%s322 + $0x220] sm:$0xf]
        %v1200 = vld [vmem:[%s322 + $0x224] sm:$0xf]
        %v1201 = vld [vmem:[%s322 + $0x228] sm:$0xf]
        %v1202 = vld [vmem:[%s322 + $0x22c] sm:$0xf]
        %v1203 = vld [vmem:[%s322 + $0x230] sm:$0xf]
        %v1204 = vld [vmem:[%s322 + $0x234] sm:$0xf]
        %v1205 = vld [vmem:[%s322 + $0x238] sm:$0xf]
        %v1206 = vld [vmem:[%s322 + $0x23c] sm:$0xf]
        %v1207 = vld [vmem:[%s322 + $0x240] sm:$0xf]
        %v1208 = vld [vmem:[%s322 + $0x244] sm:$0xf]
        %v1209 = vld [vmem:[%s322 + $0x248] sm:$0xf]
        %v1210 = vld [vmem:[%s322 + $0x24c] sm:$0xf]
        %v1211 = vld [vmem:[%s322 + $0x250] sm:$0xf]
        %v1212 = vld [vmem:[%s322 + $0x254] sm:$0xf]
        %v1213 = vld [vmem:[%s322 + $0x258] sm:$0xf]
        %v1214 = vld [vmem:[%s322 + $0x25c] sm:$0xf]
        %v1215 = vld [vmem:[%s322 + $0x260] sm:$0xf]
        %v1216 = vld [vmem:[%s322 + $0x264] sm:$0xf]
        %v1217 = vld [vmem:[%s322 + $0x268] sm:$0xf]
        %v1218 = vld [vmem:[%s322 + $0x26c] sm:$0xf]
        %v1219 = vld [vmem:[%s322 + $0x270] sm:$0xf]
        %v1220 = vld [vmem:[%s322 + $0x274] sm:$0xf]
        %v1221 = vld [vmem:[%s322 + $0x278] sm:$0xf]
        %v1222 = vld [vmem:[%s322 + $0x27c] sm:$0xf]
        %v1223 = vld [vmem:[%s322 + $0x280] sm:$0xf]
        %v1224 = vld [vmem:[%s322 + $0x284] sm:$0xf]
        %v1225 = vld [vmem:[%s322 + $0x288] sm:$0xf]
        %v1226 = vld [vmem:[%s322 + $0x28c] sm:$0xf]
        %v1227 = vld [vmem:[%s322 + $0x290] sm:$0xf]
        %v1228 = vld [vmem:[%s322 + $0x294] sm:$0xf]
        %v1229 = vld [vmem:[%s322 + $0x298] sm:$0xf]
        %v1230 = vld [vmem:[%s322 + $0x29c] sm:$0xf]
        %v1231 = vld [vmem:[%s322 + $0x2a0] sm:$0xf]
        %v1232 = vld [vmem:[%s322 + $0x2a4] sm:$0xf]
        %v1233 = vld [vmem:[%s322 + $0x2a8] sm:$0xf]
        %v1234 = vld [vmem:[%s322 + $0x2ac] sm:$0xf]
        %v1235 = vld [vmem:[%s322 + $0x2b0] sm:$0xf]
        %v1236 = vld [vmem:[%s322 + $0x2b4] sm:$0xf]
        %v1237 = vld [vmem:[%s322 + $0x2b8] sm:$0xf]
        %v1238 = vld [vmem:[%s322 + $0x2bc] sm:$0xf]
        %v1239 = vld [vmem:[%s322 + $0x2c0] sm:$0xf]
        %v1240 = vld [vmem:[%s322 + $0x2c4] sm:$0xf]
        %v1241 = vld [vmem:[%s322 + $0x2c8] sm:$0xf]
        %v1242 = vld [vmem:[%s322 + $0x2cc] sm:$0xf]
        %v1243 = vld [vmem:[%s322 + $0x2d0] sm:$0xf]
        %v1244 = vld [vmem:[%s322 + $0x2d4] sm:$0xf]
        %v1245 = vld [vmem:[%s322 + $0x2d8] sm:$0xf]
        %v1246 = vld [vmem:[%s322 + $0x2dc] sm:$0xf]
        %v1247 = vld [vmem:[%s322 + $0x2e0] sm:$0xf]
        %v1248 = vld [vmem:[%s322 + $0x2e4] sm:$0xf]
        %v1249 = vld [vmem:[%s322 + $0x2e8] sm:$0xf]
        %v1250 = vld [vmem:[%s322 + $0x2ec] sm:$0xf]
        %v1251 = vld [vmem:[%s322 + $0x2f0] sm:$0xf]
        %v1252 = vld [vmem:[%s322 + $0x2f4] sm:$0xf]
        %v1253 = vld [vmem:[%s322 + $0x2f8] sm:$0xf]
        %v1254 = vld [vmem:[%s322 + $0x2fc] sm:$0xf]
        %v1255 = vld [vmem:[%s322 + $0x300] sm:$0xf]
        %v1256 = vld [vmem:[%s322 + $0x304] sm:$0xf]
        %v1257 = vld [vmem:[%s322 + $0x308] sm:$0xf]
        %v1258 = vld [vmem:[%s322 + $0x30c] sm:$0xf]
        %v1259 = vld [vmem:[%s322 + $0x310] sm:$0xf]
        %v1260 = vld [vmem:[%s322 + $0x314] sm:$0xf]
        %v1261 = vld [vmem:[%s322 + $0x318] sm:$0xf]
        %v1262 = vld [vmem:[%s322 + $0x31c] sm:$0xf]
        %v1263 = vld [vmem:[%s322 + $0x320] sm:$0xf]
        %v1264 = vld [vmem:[%s322 + $0x324] sm:$0xf]
        %v1265 = vld [vmem:[%s322 + $0x328] sm:$0xf]
        %v1266 = vld [vmem:[%s322 + $0x32c] sm:$0xf]
        %v1267 = vld [vmem:[%s322 + $0x330] sm:$0xf]
        %v1268 = vld [vmem:[%s322 + $0x334] sm:$0xf]
        %v1269 = vld [vmem:[%s322 + $0x338] sm:$0xf]
        %v1270 = vld [vmem:[%s322 + $0x33c] sm:$0xf]
        %v1271 = vld [vmem:[%s322 + $0x340] sm:$0xf]
        %v1272 = vld [vmem:[%s322 + $0x344] sm:$0xf]
        %v1273 = vld [vmem:[%s322 + $0x348] sm:$0xf]
        %v1274 = vld [vmem:[%s322 + $0x34c] sm:$0xf]
        %v1275 = vld [vmem:[%s322 + $0x350] sm:$0xf]
        %v1276 = vld [vmem:[%s322 + $0x354] sm:$0xf]
        %v1277 = vld [vmem:[%s322 + $0x358] sm:$0xf]
        %v1278 = vld [vmem:[%s322 + $0x35c] sm:$0xf]
        %v1279 = vld [vmem:[%s322 + $0x360] sm:$0xf]
        %v1280 = vld [vmem:[%s322 + $0x364] sm:$0xf]
        %v1281 = vld [vmem:[%s322 + $0x368] sm:$0xf]
        %v1282 = vld [vmem:[%s322 + $0x36c] sm:$0xf]
        %v1283 = vld [vmem:[%s322 + $0x370] sm:$0xf]
        %v1284 = vld [vmem:[%s322 + $0x374] sm:$0xf]
        %v1285 = vld [vmem:[%s322 + $0x378] sm:$0xf]
        %v1286 = vld [vmem:[%s322 + $0x37c] sm:$0xf]
        %v1287 = vld [vmem:[%s322 + $0x380] sm:$0xf]
        %v1288 = vld [vmem:[%s322 + $0x384] sm:$0xf]
        %v1289 = vld [vmem:[%s322 + $0x388] sm:$0xf]
        %v1290 = vld [vmem:[%s322 + $0x38c] sm:$0xf]
        %v1291 = vld [vmem:[%s322 + $0x390] sm:$0xf]
        %v1292 = vld [vmem:[%s322 + $0x394] sm:$0xf]
        %v1293 = vld [vmem:[%s322 + $0x398] sm:$0xf]
        %v1294 = vld [vmem:[%s322 + $0x39c] sm:$0xf]
        %v1295 = vld [vmem:[%s322 + $0x3a0] sm:$0xf]
        %v1296 = vld [vmem:[%s322 + $0x3a4] sm:$0xf]
        %v1297 = vld [vmem:[%s322 + $0x3a8] sm:$0xf]
        %v1298 = vld [vmem:[%s322 + $0x3ac] sm:$0xf]
        %v1299 = vld [vmem:[%s322 + $0x3b0] sm:$0xf]
        %v1300 = vld [vmem:[%s322 + $0x3b4] sm:$0xf]
        %v1301 = vld [vmem:[%s322 + $0x3b8] sm:$0xf]
        %v1302 = vld [vmem:[%s322 + $0x3bc] sm:$0xf]
        %v1303 = vld [vmem:[%s322 + $0x3c0] sm:$0xf]
        %v1304 = vld [vmem:[%s322 + $0x3c4] sm:$0xf]
        %v1305 = vld [vmem:[%s322 + $0x3c8] sm:$0xf]
        %v1306 = vld [vmem:[%s322 + $0x3cc] sm:$0xf]
        %v1307 = vld [vmem:[%s322 + $0x3d0] sm:$0xf]
        %v1308 = vld [vmem:[%s322 + $0x3d4] sm:$0xf]
        %v1309 = vld [vmem:[%s322 + $0x3d8] sm:$0xf]
        %v1310 = vld [vmem:[%s322 + $0x3dc] sm:$0xf]
        %v1311 = vld [vmem:[%s322 + $0x3e0] sm:$0xf]
        %v1312 = vld [vmem:[%s322 + $0x3e4] sm:$0xf]
        %v1313 = vld [vmem:[%s322 + $0x3e8] sm:$0xf]
        %v1314 = vld [vmem:[%s322 + $0x3ec] sm:$0xf]
        %v1315 = vld [vmem:[%s322 + $0x3f0] sm:$0xf]
        %v1316 = vld [vmem:[%s322 + $0x3f4] sm:$0xf]
        %v1317 = vld [vmem:[%s322 + $0x3f8] sm:$0xf]
        %v1318 = vld [vmem:[%s322 + $0x3fc] sm:$0xf]
        %v1319 = vld [vmem:[%s322 + $0x400] sm:$0xf]
        %v1320 = vld [vmem:[%s322 + $0x404] sm:$0xf]
        %v1321 = vld [vmem:[%s322 + $0x408] sm:$0xf]
        %v1322 = vld [vmem:[%s322 + $0x40c] sm:$0xf]
        %v1323 = vld [vmem:[%s322 + $0x410] sm:$0xf]
        %v1324 = vld [vmem:[%s322 + $0x414] sm:$0xf]
        %v1325 = vld [vmem:[%s322 + $0x418] sm:$0xf]
        %v1326 = vld [vmem:[%s322 + $0x41c] sm:$0xf]
        %v1327 = vld [vmem:[%s322 + $0x420] sm:$0xf]
        %v1328 = vld [vmem:[%s322 + $0x424] sm:$0xf]
        %v1329 = vld [vmem:[%s322 + $0x428] sm:$0xf]
        %v1330 = vld [vmem:[%s322 + $0x42c] sm:$0xf]
        %v1331 = vld [vmem:[%s322 + $0x430] sm:$0xf]
        %v1332 = vld [vmem:[%s322 + $0x434] sm:$0xf]
        %v1333 = vld [vmem:[%s322 + $0x438] sm:$0xf]
        %v1334 = vld [vmem:[%s322 + $0x43c] sm:$0xf]
        %v1335 = vld [vmem:[%s322 + $0x440] sm:$0xf]
        %v1336 = vld [vmem:[%s322 + $0x444] sm:$0xf]
        %v1337 = vld [vmem:[%s322 + $0x448] sm:$0xf]
        %v1338 = vld [vmem:[%s322 + $0x44c] sm:$0xf]
        %v1339 = vld [vmem:[%s322 + $0x450] sm:$0xf]
        %v1340 = vld [vmem:[%s322 + $0x454] sm:$0xf]
        %v1341 = vld [vmem:[%s322 + $0x458] sm:$0xf]
        %v1342 = vld [vmem:[%s322 + $0x45c] sm:$0xf]
        %v1343 = vld [vmem:[%s322 + $0x460] sm:$0xf]
        %v1344 = vld [vmem:[%s322 + $0x464] sm:$0xf]
        %v1345 = vld [vmem:[%s322 + $0x468] sm:$0xf]
        %v1346 = vld [vmem:[%s322 + $0x46c] sm:$0xf]
        %v1347 = vld [vmem:[%s322 + $0x470] sm:$0xf]
        %v1348 = vld [vmem:[%s322 + $0x474] sm:$0xf]
        %v1349 = vld [vmem:[%s322 + $0x478] sm:$0xf]
        %v1350 = vld [vmem:[%s322 + $0x47c] sm:$0xf]
        %v1351 = vld [vmem:[%s322 + $0x480] sm:$0xf]
        %v1352 = vld [vmem:[%s322 + $0x484] sm:$0xf]
        %v1353 = vld [vmem:[%s322 + $0x488] sm:$0xf]
        %v1354 = vld [vmem:[%s322 + $0x48c] sm:$0xf]
        %v1355 = vld [vmem:[%s322 + $0x490] sm:$0xf]
        %v1356 = vld [vmem:[%s322 + $0x494] sm:$0xf]
        %v1357 = vld [vmem:[%s322 + $0x498] sm:$0xf]
        %v1358 = vld [vmem:[%s322 + $0x49c] sm:$0xf]
        %v1359 = vld [vmem:[%s322 + $0x4a0] sm:$0xf]
        %v1360 = vld [vmem:[%s322 + $0x4a4] sm:$0xf]
        %v1361 = vld [vmem:[%s322 + $0x4a8] sm:$0xf]
        %v1362 = vld [vmem:[%s322 + $0x4ac] sm:$0xf]
        %v1363 = vld [vmem:[%s322 + $0x4b0] sm:$0xf]
        %v1364 = vld [vmem:[%s322 + $0x4b4] sm:$0xf]
        %v1365 = vld [vmem:[%s322 + $0x4b8] sm:$0xf]
        %v1366 = vld [vmem:[%s322 + $0x4bc] sm:$0xf]
        %v1671 = vunpack.c.l.b16 %v1063
        %v1672 = vunpack.c.l.b16 %v1064
        %v1673 = vunpack.c.l.b16 %v1065
        %v1674 = vunpack.c.l.b16 %v1066
        %v1675 = vunpack.c.l.b16 %v1067
        %v1676 = vunpack.c.l.b16 %v1068
        %v1677 = vunpack.c.l.b16 %v1069
        %v1678 = vunpack.c.l.b16 %v1070
        %v1679 = vunpack.c.l.b16 %v1071
        %v1680 = vunpack.c.l.b16 %v1072
        %v1681 = vunpack.c.l.b16 %v1073
        %v1682 = vunpack.c.l.b16 %v1074
        %v1683 = vunpack.c.l.b16 %v1075
        %v1684 = vunpack.c.l.b16 %v1076
        %v1685 = vunpack.c.l.b16 %v1077
        %v1686 = vunpack.c.l.b16 %v1078
        %v1687 = vunpack.c.l.b16 %v1079
        %v1688 = vunpack.c.l.b16 %v1080
        %v1689 = vunpack.c.l.b16 %v1081
        %v1690 = vunpack.c.l.b16 %v1082
        %v1691 = vunpack.c.l.b16 %v1083
        %v1692 = vunpack.c.l.b16 %v1084
        %v1693 = vunpack.c.l.b16 %v1085
        %v1694 = vunpack.c.l.b16 %v1086
        %v1695 = vunpack.c.l.b16 %v1087
        %v1696 = vunpack.c.l.b16 %v1088
        %v1697 = vunpack.c.l.b16 %v1089
        %v1698 = vunpack.c.l.b16 %v1090
        %v1699 = vunpack.c.l.b16 %v1091
        %v1700 = vunpack.c.l.b16 %v1092
        %v1701 = vunpack.c.l.b16 %v1093
        %v1702 = vunpack.c.l.b16 %v1094
        %v1703 = vunpack.c.l.b16 %v1095
        %v1704 = vunpack.c.l.b16 %v1096
        %v1705 = vunpack.c.l.b16 %v1097
        %v1706 = vunpack.c.l.b16 %v1098
        %v1707 = vunpack.c.l.b16 %v1099
        %v1708 = vunpack.c.l.b16 %v1100
        %v1709 = vunpack.c.l.b16 %v1101
        %v1710 = vunpack.c.l.b16 %v1102
        %v1711 = vunpack.c.l.b16 %v1103
        %v1712 = vunpack.c.l.b16 %v1104
        %v1713 = vunpack.c.l.b16 %v1105
        %v1714 = vunpack.c.l.b16 %v1106
        %v1715 = vunpack.c.l.b16 %v1107
        %v1716 = vunpack.c.l.b16 %v1108
        %v1717 = vunpack.c.l.b16 %v1109
        %v1718 = vunpack.c.l.b16 %v1110
        %v1719 = vunpack.c.l.b16 %v1111
        %v1720 = vunpack.c.l.b16 %v1112
        %v1721 = vunpack.c.l.b16 %v1113
        %v1722 = vunpack.c.l.b16 %v1114
        %v1723 = vunpack.c.l.b16 %v1115
        %v1724 = vunpack.c.l.b16 %v1116
        %v1725 = vunpack.c.l.b16 %v1117
        %v1726 = vunpack.c.l.b16 %v1118
        %v1727 = vunpack.c.l.b16 %v1119
        %v1728 = vunpack.c.l.b16 %v1120
        %v1729 = vunpack.c.l.b16 %v1121
        %v1730 = vunpack.c.l.b16 %v1122
        %v1731 = vunpack.c.l.b16 %v1123
        %v1732 = vunpack.c.l.b16 %v1124
        %v1733 = vunpack.c.l.b16 %v1125
        %v1734 = vunpack.c.l.b16 %v1126
        %v1735 = vunpack.c.l.b16 %v1127
        %v1736 = vunpack.c.l.b16 %v1128
        %v1737 = vunpack.c.l.b16 %v1129
        %v1738 = vunpack.c.l.b16 %v1130
        %v1739 = vunpack.c.l.b16 %v1131
        %v1740 = vunpack.c.l.b16 %v1132
        %v1741 = vunpack.c.l.b16 %v1133
        %v1742 = vunpack.c.l.b16 %v1134
        %v1743 = vunpack.c.l.b16 %v1135
        %v1744 = vunpack.c.l.b16 %v1136
        %v1745 = vunpack.c.l.b16 %v1137
        %v1746 = vunpack.c.l.b16 %v1138
        %v1747 = vunpack.c.l.b16 %v1139
        %v1748 = vunpack.c.l.b16 %v1140
        %v1749 = vunpack.c.l.b16 %v1141
        %v1750 = vunpack.c.l.b16 %v1142
        %v1751 = vunpack.c.l.b16 %v1143
        %v1752 = vunpack.c.l.b16 %v1144
        %v1753 = vunpack.c.l.b16 %v1145
        %v1754 = vunpack.c.l.b16 %v1146
        %v1755 = vunpack.c.l.b16 %v1147
        %v1756 = vunpack.c.l.b16 %v1148
        %v1757 = vunpack.c.l.b16 %v1149
        %v1758 = vunpack.c.l.b16 %v1150
        %v1759 = vunpack.c.l.b16 %v1151
        %v1760 = vunpack.c.l.b16 %v1152
        %v1761 = vunpack.c.l.b16 %v1153
        %v1762 = vunpack.c.l.b16 %v1154
        %v1763 = vunpack.c.l.b16 %v1155
        %v1764 = vunpack.c.l.b16 %v1156
        %v1765 = vunpack.c.l.b16 %v1157
        %v1766 = vunpack.c.l.b16 %v1158
        %v1767 = vunpack.c.l.b16 %v1159
        %v1768 = vunpack.c.l.b16 %v1160
        %v1769 = vunpack.c.l.b16 %v1161
        %v1770 = vunpack.c.l.b16 %v1162
        %v1771 = vunpack.c.l.b16 %v1163
        %v1772 = vunpack.c.l.b16 %v1164
        %v1773 = vunpack.c.l.b16 %v1165
        %v1774 = vunpack.c.l.b16 %v1166
        %v1775 = vunpack.c.l.b16 %v1167
        %v1776 = vunpack.c.l.b16 %v1168
        %v1777 = vunpack.c.l.b16 %v1169
        %v1778 = vunpack.c.l.b16 %v1170
        %v1779 = vunpack.c.l.b16 %v1171
        %v1780 = vunpack.c.l.b16 %v1172
        %v1781 = vunpack.c.l.b16 %v1173
        %v1782 = vunpack.c.l.b16 %v1174
        %v1783 = vunpack.c.l.b16 %v1175
        %v1784 = vunpack.c.l.b16 %v1176
        %v1785 = vunpack.c.l.b16 %v1177
        %v1786 = vunpack.c.l.b16 %v1178
        %v1787 = vunpack.c.l.b16 %v1179
        %v1788 = vunpack.c.l.b16 %v1180
        %v1789 = vunpack.c.l.b16 %v1181
        %v1790 = vunpack.c.l.b16 %v1182
        %v1791 = vunpack.c.l.b16 %v1183
        %v1792 = vunpack.c.l.b16 %v1184
        %v1793 = vunpack.c.l.b16 %v1185
        %v1794 = vunpack.c.l.b16 %v1186
        %v1795 = vunpack.c.l.b16 %v1187
        %v1796 = vunpack.c.l.b16 %v1188
        %v1797 = vunpack.c.l.b16 %v1189
        %v1798 = vunpack.c.l.b16 %v1190
        %v1799 = vunpack.c.l.b16 %v1191
        %v1800 = vunpack.c.l.b16 %v1192
        %v1801 = vunpack.c.l.b16 %v1193
        %v1802 = vunpack.c.l.b16 %v1194
        %v1803 = vunpack.c.l.b16 %v1195
        %v1804 = vunpack.c.l.b16 %v1196
        %v1805 = vunpack.c.l.b16 %v1197
        %v1806 = vunpack.c.l.b16 %v1198
        %v1807 = vunpack.c.l.b16 %v1199
        %v1808 = vunpack.c.l.b16 %v1200
        %v1809 = vunpack.c.l.b16 %v1201
        %v1810 = vunpack.c.l.b16 %v1202
        %v1811 = vunpack.c.l.b16 %v1203
        %v1812 = vunpack.c.l.b16 %v1204
        %v1813 = vunpack.c.l.b16 %v1205
        %v1814 = vunpack.c.l.b16 %v1206
        %v1815 = vunpack.c.l.b16 %v1207
        %v1816 = vunpack.c.l.b16 %v1208
        %v1817 = vunpack.c.l.b16 %v1209
        %v1818 = vunpack.c.l.b16 %v1210
        %v1819 = vunpack.c.l.b16 %v1211
        %v1820 = vunpack.c.l.b16 %v1212
        %v1821 = vunpack.c.l.b16 %v1213
        %v1822 = vunpack.c.l.b16 %v1214
        %v1823 = vunpack.c.l.b16 %v1215
        %v1824 = vunpack.c.l.b16 %v1216
        %v1825 = vunpack.c.l.b16 %v1217
        %v1826 = vunpack.c.l.b16 %v1218
        %v1827 = vunpack.c.l.b16 %v1219
        %v1828 = vunpack.c.l.b16 %v1220
        %v1829 = vunpack.c.l.b16 %v1221
        %v1830 = vunpack.c.l.b16 %v1222
        %v1831 = vunpack.c.l.b16 %v1223
        %v1832 = vunpack.c.l.b16 %v1224
        %v1833 = vunpack.c.l.b16 %v1225
        %v1834 = vunpack.c.l.b16 %v1226
        %v1835 = vunpack.c.l.b16 %v1227
        %v1836 = vunpack.c.l.b16 %v1228
        %v1837 = vunpack.c.l.b16 %v1229
        %v1838 = vunpack.c.l.b16 %v1230
        %v1839 = vunpack.c.l.b16 %v1231
        %v1840 = vunpack.c.l.b16 %v1232
        %v1841 = vunpack.c.l.b16 %v1233
        %v1842 = vunpack.c.l.b16 %v1234
        %v1843 = vunpack.c.l.b16 %v1235
        %v1844 = vunpack.c.l.b16 %v1236
        %v1845 = vunpack.c.l.b16 %v1237
        %v1846 = vunpack.c.l.b16 %v1238
        %v1847 = vunpack.c.l.b16 %v1239
        %v1848 = vunpack.c.l.b16 %v1240
        %v1849 = vunpack.c.l.b16 %v1241
        %v1850 = vunpack.c.l.b16 %v1242
        %v1851 = vunpack.c.l.b16 %v1243
        %v1852 = vunpack.c.l.b16 %v1244
        %v1853 = vunpack.c.l.b16 %v1245
        %v1854 = vunpack.c.l.b16 %v1246
        %v1855 = vunpack.c.l.b16 %v1247
        %v1856 = vunpack.c.l.b16 %v1248
        %v1857 = vunpack.c.l.b16 %v1249
        %v1858 = vunpack.c.l.b16 %v1250
        %v1859 = vunpack.c.l.b16 %v1251
        %v1860 = vunpack.c.l.b16 %v1252
        %v1861 = vunpack.c.l.b16 %v1253
        %v1862 = vunpack.c.l.b16 %v1254
        %v1863 = vunpack.c.l.b16 %v1255
        %v1864 = vunpack.c.l.b16 %v1256
        %v1865 = vunpack.c.l.b16 %v1257
        %v1866 = vunpack.c.l.b16 %v1258
        %v1867 = vunpack.c.l.b16 %v1259
        %v1868 = vunpack.c.l.b16 %v1260
        %v1869 = vunpack.c.l.b16 %v1261
        %v1870 = vunpack.c.l.b16 %v1262
        %v1871 = vunpack.c.l.b16 %v1263
        %v1872 = vunpack.c.l.b16 %v1264
        %v1873 = vunpack.c.l.b16 %v1265
        %v1874 = vunpack.c.l.b16 %v1266
        %v1875 = vunpack.c.l.b16 %v1267
        %v1876 = vunpack.c.l.b16 %v1268
        %v1877 = vunpack.c.l.b16 %v1269
        %v1878 = vunpack.c.l.b16 %v1270
        %v1879 = vunpack.c.l.b16 %v1271
        %v1880 = vunpack.c.l.b16 %v1272
        %v1881 = vunpack.c.l.b16 %v1273
        %v1882 = vunpack.c.l.b16 %v1274
        %v1883 = vunpack.c.l.b16 %v1275
        %v1884 = vunpack.c.l.b16 %v1276
        %v1885 = vunpack.c.l.b16 %v1277
        %v1886 = vunpack.c.l.b16 %v1278
        %v1887 = vunpack.c.l.b16 %v1279
        %v1888 = vunpack.c.l.b16 %v1280
        %v1889 = vunpack.c.l.b16 %v1281
        %v1890 = vunpack.c.l.b16 %v1282
        %v1891 = vunpack.c.l.b16 %v1283
        %v1892 = vunpack.c.l.b16 %v1284
        %v1893 = vunpack.c.l.b16 %v1285
        %v1894 = vunpack.c.l.b16 %v1286
        %v1895 = vunpack.c.l.b16 %v1287
        %v1896 = vunpack.c.l.b16 %v1288
        %v1897 = vunpack.c.l.b16 %v1289
        %v1898 = vunpack.c.l.b16 %v1290
        %v1899 = vunpack.c.l.b16 %v1291
        %v1900 = vunpack.c.l.b16 %v1292
        %v1901 = vunpack.c.l.b16 %v1293
        %v1902 = vunpack.c.l.b16 %v1294
        %v1903 = vunpack.c.l.b16 %v1295
        %v1904 = vunpack.c.l.b16 %v1296
        %v1905 = vunpack.c.l.b16 %v1297
        %v1906 = vunpack.c.l.b16 %v1298
        %v1907 = vunpack.c.l.b16 %v1299
        %v1908 = vunpack.c.l.b16 %v1300
        %v1909 = vunpack.c.l.b16 %v1301
        %v1910 = vunpack.c.l.b16 %v1302
        %v1911 = vunpack.c.l.b16 %v1303
        %v1912 = vunpack.c.l.b16 %v1304
        %v1913 = vunpack.c.l.b16 %v1305
        %v1914 = vunpack.c.l.b16 %v1306
        %v1915 = vunpack.c.l.b16 %v1307
        %v1916 = vunpack.c.l.b16 %v1308
        %v1917 = vunpack.c.l.b16 %v1309
        %v1918 = vunpack.c.l.b16 %v1310
        %v1919 = vunpack.c.l.b16 %v1311
        %v1920 = vunpack.c.l.b16 %v1312
        %v1921 = vunpack.c.l.b16 %v1313
        %v1922 = vunpack.c.l.b16 %v1314
        %v1923 = vunpack.c.l.b16 %v1315
        %v1924 = vunpack.c.l.b16 %v1316
        %v1925 = vunpack.c.l.b16 %v1317
        %v1926 = vunpack.c.l.b16 %v1318
        %v1927 = vunpack.c.l.b16 %v1319
        %v1928 = vunpack.c.l.b16 %v1320
        %v1929 = vunpack.c.l.b16 %v1321
        %v1930 = vunpack.c.l.b16 %v1322
        %v1931 = vunpack.c.l.b16 %v1323
        %v1932 = vunpack.c.l.b16 %v1324
        %v1933 = vunpack.c.l.b16 %v1325
        %v1934 = vunpack.c.l.b16 %v1326
        %v1935 = vunpack.c.l.b16 %v1327
        %v1936 = vunpack.c.l.b16 %v1328
        %v1937 = vunpack.c.l.b16 %v1329
        %v1938 = vunpack.c.l.b16 %v1330
        %v1939 = vunpack.c.l.b16 %v1331
        %v1940 = vunpack.c.l.b16 %v1332
        %v1941 = vunpack.c.l.b16 %v1333
        %v1942 = vunpack.c.l.b16 %v1334
        %v1943 = vunpack.c.l.b16 %v1335
        %v1944 = vunpack.c.l.b16 %v1336
        %v1945 = vunpack.c.l.b16 %v1337
        %v1946 = vunpack.c.l.b16 %v1338
        %v1947 = vunpack.c.l.b16 %v1339
        %v1948 = vunpack.c.l.b16 %v1340
        %v1949 = vunpack.c.l.b16 %v1341
        %v1950 = vunpack.c.l.b16 %v1342
        %v1951 = vunpack.c.l.b16 %v1343
        %v1952 = vunpack.c.l.b16 %v1344
        %v1953 = vunpack.c.l.b16 %v1345
        %v1954 = vunpack.c.l.b16 %v1346
        %v1955 = vunpack.c.l.b16 %v1347
        %v1956 = vunpack.c.l.b16 %v1348
        %v1957 = vunpack.c.l.b16 %v1349
        %v1958 = vunpack.c.l.b16 %v1350
        %v1959 = vunpack.c.l.b16 %v1351
        %v1960 = vunpack.c.l.b16 %v1352
        %v1961 = vunpack.c.l.b16 %v1353
        %v1962 = vunpack.c.l.b16 %v1354
        %v1963 = vunpack.c.l.b16 %v1355
        %v1964 = vunpack.c.l.b16 %v1356
        %v1965 = vunpack.c.l.b16 %v1357
        %v1966 = vunpack.c.l.b16 %v1358
        %v1967 = vunpack.c.l.b16 %v1359
        %v1968 = vunpack.c.l.b16 %v1360
        %v1969 = vunpack.c.l.b16 %v1361
        %v1970 = vunpack.c.l.b16 %v1362
        %v1971 = vunpack.c.l.b16 %v1363
        %v1972 = vunpack.c.l.b16 %v1364
        %v1973 = vunpack.c.l.b16 %v1365
        %v1974 = vunpack.c.l.b16 %v1366
        %v1975 = vpack.c.b16 %v1672, %v1671
        %v1976 = vpack.c.b16 %v1674, %v1673
        %v1977 = vpack.c.b16 %v1676, %v1675
        %v1978 = vpack.c.b16 %v1678, %v1677
        %v1979 = vpack.c.b16 %v1680, %v1679
        %v1980 = vpack.c.b16 %v1682, %v1681
        %v1981 = vpack.c.b16 %v1684, %v1683
        %v1982 = vpack.c.b16 %v1686, %v1685
        %v1983 = vpack.c.b16 %v1688, %v1687
        %v1984 = vpack.c.b16 %v1690, %v1689
        %v1985 = vpack.c.b16 %v1692, %v1691
        %v1986 = vpack.c.b16 %v1694, %v1693
        %v1987 = vpack.c.b16 %v1696, %v1695
        %v1988 = vpack.c.b16 %v1698, %v1697
        %v1989 = vpack.c.b16 %v1700, %v1699
        %v1990 = vpack.c.b16 %v1702, %v1701
        %v1991 = vpack.c.b16 %v1704, %v1703
        %v1992 = vpack.c.b16 %v1706, %v1705
        %v1993 = vpack.c.b16 %v1708, %v1707
        %v1994 = vpack.c.b16 %v1710, %v1709
        %v1995 = vpack.c.b16 %v1712, %v1711
        %v1996 = vpack.c.b16 %v1714, %v1713
        %v1997 = vpack.c.b16 %v1716, %v1715
        %v1998 = vpack.c.b16 %v1718, %v1717
        %v1999 = vpack.c.b16 %v1720, %v1719
        %v2000 = vpack.c.b16 %v1722, %v1721
        %v2001 = vpack.c.b16 %v1724, %v1723
        %v2002 = vpack.c.b16 %v1726, %v1725
        %v2003 = vpack.c.b16 %v1728, %v1727
        %v2004 = vpack.c.b16 %v1730, %v1729
        %v2005 = vpack.c.b16 %v1732, %v1731
        %v2006 = vpack.c.b16 %v1734, %v1733
        %v2007 = vpack.c.b16 %v1736, %v1735
        %v2008 = vpack.c.b16 %v1738, %v1737
        %v2009 = vpack.c.b16 %v1740, %v1739
        %v2010 = vpack.c.b16 %v1742, %v1741
        %v2011 = vpack.c.b16 %v1744, %v1743
        %v2012 = vpack.c.b16 %v1746, %v1745
        %v2013 = vpack.c.b16 %v1748, %v1747
        %v2014 = vpack.c.b16 %v1750, %v1749
        %v2015 = vpack.c.b16 %v1752, %v1751
        %v2016 = vpack.c.b16 %v1754, %v1753
        %v2017 = vpack.c.b16 %v1756, %v1755
        %v2018 = vpack.c.b16 %v1758, %v1757
        %v2019 = vpack.c.b16 %v1760, %v1759
        %v2020 = vpack.c.b16 %v1762, %v1761
        %v2021 = vpack.c.b16 %v1764, %v1763
        %v2022 = vpack.c.b16 %v1766, %v1765
        %v2023 = vpack.c.b16 %v1768, %v1767
        %v2024 = vpack.c.b16 %v1770, %v1769
        %v2025 = vpack.c.b16 %v1772, %v1771
        %v2026 = vpack.c.b16 %v1774, %v1773
        %v2027 = vpack.c.b16 %v1776, %v1775
        %v2028 = vpack.c.b16 %v1778, %v1777
        %v2029 = vpack.c.b16 %v1780, %v1779
        %v2030 = vpack.c.b16 %v1782, %v1781
        %v2031 = vpack.c.b16 %v1784, %v1783
        %v2032 = vpack.c.b16 %v1786, %v1785
        %v2033 = vpack.c.b16 %v1788, %v1787
        %v2034 = vpack.c.b16 %v1790, %v1789
        %v2035 = vpack.c.b16 %v1792, %v1791
        %v2036 = vpack.c.b16 %v1794, %v1793
        %v2037 = vpack.c.b16 %v1796, %v1795
        %v2038 = vpack.c.b16 %v1798, %v1797
        %v2039 = vpack.c.b16 %v1800, %v1799
        %v2040 = vpack.c.b16 %v1802, %v1801
        %v2041 = vpack.c.b16 %v1804, %v1803
        %v2042 = vpack.c.b16 %v1806, %v1805
        %v2043 = vpack.c.b16 %v1808, %v1807
        %v2044 = vpack.c.b16 %v1810, %v1809
        %v2045 = vpack.c.b16 %v1812, %v1811
        %v2046 = vpack.c.b16 %v1814, %v1813
        %v2047 = vpack.c.b16 %v1816, %v1815
        %v2048 = vpack.c.b16 %v1818, %v1817
        %v2049 = vpack.c.b16 %v1820, %v1819
        %v2050 = vpack.c.b16 %v1822, %v1821
        %v2051 = vpack.c.b16 %v1824, %v1823
        %v2052 = vpack.c.b16 %v1826, %v1825
        %v2053 = vpack.c.b16 %v1828, %v1827
        %v2054 = vpack.c.b16 %v1830, %v1829
        %v2055 = vpack.c.b16 %v1832, %v1831
        %v2056 = vpack.c.b16 %v1834, %v1833
        %v2057 = vpack.c.b16 %v1836, %v1835
        %v2058 = vpack.c.b16 %v1838, %v1837
        %v2059 = vpack.c.b16 %v1840, %v1839
        %v2060 = vpack.c.b16 %v1842, %v1841
        %v2061 = vpack.c.b16 %v1844, %v1843
        %v2062 = vpack.c.b16 %v1846, %v1845
        %v2063 = vpack.c.b16 %v1848, %v1847
        %v2064 = vpack.c.b16 %v1850, %v1849
        %v2065 = vpack.c.b16 %v1852, %v1851
        %v2066 = vpack.c.b16 %v1854, %v1853
        %v2067 = vpack.c.b16 %v1856, %v1855
        %v2068 = vpack.c.b16 %v1858, %v1857
        %v2069 = vpack.c.b16 %v1860, %v1859
        %v2070 = vpack.c.b16 %v1862, %v1861
        %v2071 = vpack.c.b16 %v1864, %v1863
        %v2072 = vpack.c.b16 %v1866, %v1865
        %v2073 = vpack.c.b16 %v1868, %v1867
        %v2074 = vpack.c.b16 %v1870, %v1869
        %v2075 = vpack.c.b16 %v1872, %v1871
        %v2076 = vpack.c.b16 %v1874, %v1873
        %v2077 = vpack.c.b16 %v1876, %v1875
        %v2078 = vpack.c.b16 %v1878, %v1877
        %v2079 = vpack.c.b16 %v1880, %v1879
        %v2080 = vpack.c.b16 %v1882, %v1881
        %v2081 = vpack.c.b16 %v1884, %v1883
        %v2082 = vpack.c.b16 %v1886, %v1885
        %v2083 = vpack.c.b16 %v1888, %v1887
        %v2084 = vpack.c.b16 %v1890, %v1889
        %v2085 = vpack.c.b16 %v1892, %v1891
        %v2086 = vpack.c.b16 %v1894, %v1893
        %v2087 = vpack.c.b16 %v1896, %v1895
        %v2088 = vpack.c.b16 %v1898, %v1897
        %v2089 = vpack.c.b16 %v1900, %v1899
        %v2090 = vpack.c.b16 %v1902, %v1901
        %v2091 = vpack.c.b16 %v1904, %v1903
        %v2092 = vpack.c.b16 %v1906, %v1905
        %v2093 = vpack.c.b16 %v1908, %v1907
        %v2094 = vpack.c.b16 %v1910, %v1909
        %v2095 = vpack.c.b16 %v1912, %v1911
        %v2096 = vpack.c.b16 %v1914, %v1913
        %v2097 = vpack.c.b16 %v1916, %v1915
        %v2098 = vpack.c.b16 %v1918, %v1917
        %v2099 = vpack.c.b16 %v1920, %v1919
        %v2100 = vpack.c.b16 %v1922, %v1921
        %v2101 = vpack.c.b16 %v1924, %v1923
        %v2102 = vpack.c.b16 %v1926, %v1925
        %v2103 = vpack.c.b16 %v1928, %v1927
        %v2104 = vpack.c.b16 %v1930, %v1929
        %v2105 = vpack.c.b16 %v1932, %v1931
        %v2106 = vpack.c.b16 %v1934, %v1933
        %v2107 = vpack.c.b16 %v1936, %v1935
        %v2108 = vpack.c.b16 %v1938, %v1937
        %v2109 = vpack.c.b16 %v1940, %v1939
        %v2110 = vpack.c.b16 %v1942, %v1941
        %v2111 = vpack.c.b16 %v1944, %v1943
        %v2112 = vpack.c.b16 %v1946, %v1945
        %v2113 = vpack.c.b16 %v1948, %v1947
        %v2114 = vpack.c.b16 %v1950, %v1949
        %v2115 = vpack.c.b16 %v1952, %v1951
        %v2116 = vpack.c.b16 %v1954, %v1953
        %v2117 = vpack.c.b16 %v1956, %v1955
        %v2118 = vpack.c.b16 %v1958, %v1957
        %v2119 = vpack.c.b16 %v1960, %v1959
        %v2120 = vpack.c.b16 %v1962, %v1961
        %v2121 = vpack.c.b16 %v1964, %v1963
        %v2122 = vpack.c.b16 %v1966, %v1965
        %v2123 = vpack.c.b16 %v1968, %v1967
        %v2124 = vpack.c.b16 %v1970, %v1969
        %v2125 = vpack.c.b16 %v1972, %v1971
        %v2126 = vpack.c.b16 %v1974, %v1973
        %2279 = vmatpush.bf16.msra.mxu0 %v1982
        %2280 = vmatpush.bf16.msra.mxu0 %v1981
        %2281 = vmatpush.bf16.msra.mxu0 %v1980
        %2282 = vmatpush.bf16.msra.mxu0 %v1979
        %2283 = vmatpush.bf16.msra.mxu0 %v1978
        %2284 = vmatpush.bf16.msra.mxu0 %v1977
        %2285 = vmatpush.bf16.msra.mxu0 %v1976
        %2286 = vmatpush.bf16.msra.mxu0 %v1975
        %2287 = vmatmul.bf16.gmra.mxu0 %v1043
        %v2288 = vpop.f32.mrf.mxu0
        %v2289 = vadd.f32 0.0, %v2288
        %v2290 = vpop.f32.mrf.mxu0
        %2291 = vdwg.mxu0
        %2292 = vmatpush.bf16.msra.mxu0 %v1990
        %2293 = vmatpush.bf16.msra.mxu0 %v1989
        %2294 = vmatpush.bf16.msra.mxu0 %v1988
        %2295 = vmatpush.bf16.msra.mxu0 %v1987
        %2296 = vmatpush.bf16.msra.mxu0 %v1986
        %2297 = vmatpush.bf16.msra.mxu0 %v1985
        %2298 = vmatpush.bf16.msra.mxu0 %v1984
        %2299 = vmatpush.bf16.msra.mxu0 %v1983
        %2300 = vmatmul.bf16.gmra.mxu0 %v1044
        %v2301 = vpop.f32.mrf.mxu0
        %v2302 = vadd.f32 %v2289, %v2301
        %v2303 = vpop.f32.mrf.mxu0
        %2304 = vdwg.mxu0
        %2305 = vmatpush.bf16.msra.mxu0 %v1998
        %2306 = vmatpush.bf16.msra.mxu0 %v1997
        %2307 = vmatpush.bf16.msra.mxu0 %v1996
        %2308 = vmatpush.bf16.msra.mxu0 %v1995
        %2309 = vmatpush.bf16.msra.mxu0 %v1994
        %2310 = vmatpush.bf16.msra.mxu0 %v1993
        %2311 = vmatpush.bf16.msra.mxu0 %v1992
        %2312 = vmatpush.bf16.msra.mxu0 %v1991
        %2313 = vmatmul.bf16.gmra.mxu0 %v1045
        %v2314 = vpop.f32.mrf.mxu0
        %v2315 = vadd.f32 %v2302, %v2314
        %v2316 = vpop.f32.mrf.mxu0
        %2317 = vdwg.mxu0
        %2318 = vmatpush.bf16.msra.mxu0 %v2006
        %2319 = vmatpush.bf16.msra.mxu0 %v2005
        %2320 = vmatpush.bf16.msra.mxu0 %v2004
        %2321 = vmatpush.bf16.msra.mxu0 %v2003
        %2322 = vmatpush.bf16.msra.mxu0 %v2002
        %2323 = vmatpush.bf16.msra.mxu0 %v2001
        %2324 = vmatpush.bf16.msra.mxu0 %v2000
        %2325 = vmatpush.bf16.msra.mxu0 %v1999
        %2326 = vmatmul.bf16.gmra.mxu0 %v1046
        %v2327 = vpop.f32.mrf.mxu0
        %v2328 = vadd.f32 %v2315, %v2327
        %v2329 = vpop.f32.mrf.mxu0
        %2330 = vdwg.mxu0
        %2331 = vmatpush.bf16.msra.mxu0 %v2014
        %2332 = vmatpush.bf16.msra.mxu0 %v2013
        %2333 = vmatpush.bf16.msra.mxu0 %v2012
        %2334 = vmatpush.bf16.msra.mxu0 %v2011
        %2335 = vmatpush.bf16.msra.mxu0 %v2010
        %2336 = vmatpush.bf16.msra.mxu0 %v2009
        %2337 = vmatpush.bf16.msra.mxu0 %v2008
        %2338 = vmatpush.bf16.msra.mxu0 %v2007
        %2339 = vmatmul.bf16.gmra.mxu0 %v1047
        %v2340 = vpop.f32.mrf.mxu0
        %v2341 = vadd.f32 %v2328, %v2340
        %v2342 = vpop.f32.mrf.mxu0
        %2343 = vdwg.mxu0
        %2344 = vmatpush.bf16.msra.mxu0 %v2022
        %2345 = vmatpush.bf16.msra.mxu0 %v2021
        %2346 = vmatpush.bf16.msra.mxu0 %v2020
        %2347 = vmatpush.bf16.msra.mxu0 %v2019
        %2348 = vmatpush.bf16.msra.mxu0 %v2018
        %2349 = vmatpush.bf16.msra.mxu0 %v2017
        %2350 = vmatpush.bf16.msra.mxu0 %v2016
        %2351 = vmatpush.bf16.msra.mxu0 %v2015
        %2352 = vmatmul.bf16.gmra.mxu0 %v1048
        %v2353 = vpop.f32.mrf.mxu0
        %v2354 = vadd.f32 %v2341, %v2353
        %v2355 = vpop.f32.mrf.mxu0
        %2356 = vdwg.mxu0
        %2357 = vmatpush.bf16.msra.mxu0 %v2030
        %2358 = vmatpush.bf16.msra.mxu0 %v2029
        %2359 = vmatpush.bf16.msra.mxu0 %v2028
        %2360 = vmatpush.bf16.msra.mxu0 %v2027
        %2361 = vmatpush.bf16.msra.mxu0 %v2026
        %2362 = vmatpush.bf16.msra.mxu0 %v2025
        %2363 = vmatpush.bf16.msra.mxu0 %v2024
        %2364 = vmatpush.bf16.msra.mxu0 %v2023
        %2365 = vmatmul.bf16.gmra.mxu0 %v1049
        %v2366 = vpop.f32.mrf.mxu0
        %v2367 = vadd.f32 %v2354, %v2366
        %v2368 = vpop.f32.mrf.mxu0
        %2369 = vdwg.mxu0
        %2370 = vmatpush.bf16.msra.mxu0 %v2038
        %2371 = vmatpush.bf16.msra.mxu0 %v2037
        %2372 = vmatpush.bf16.msra.mxu0 %v2036
        %2373 = vmatpush.bf16.msra.mxu0 %v2035
        %2374 = vmatpush.bf16.msra.mxu0 %v2034
        %2375 = vmatpush.bf16.msra.mxu0 %v2033
        %2376 = vmatpush.bf16.msra.mxu0 %v2032
        %2377 = vmatpush.bf16.msra.mxu0 %v2031
        %2378 = vmatmul.bf16.gmra.mxu0 %v1050
        %v2379 = vpop.f32.mrf.mxu0
        %v2380 = vadd.f32 %v2367, %v2379
        %v2381 = vpop.f32.mrf.mxu0
        %2382 = vdwg.mxu0
        %2383 = vmatpush.bf16.msra.mxu0 %v2046
        %2384 = vmatpush.bf16.msra.mxu0 %v2045
        %2385 = vmatpush.bf16.msra.mxu0 %v2044
        %2386 = vmatpush.bf16.msra.mxu0 %v2043
        %2387 = vmatpush.bf16.msra.mxu0 %v2042
        %2388 = vmatpush.bf16.msra.mxu0 %v2041
        %2389 = vmatpush.bf16.msra.mxu0 %v2040
        %2390 = vmatpush.bf16.msra.mxu0 %v2039
        %2391 = vmatmul.bf16.gmra.mxu0 %v1051
        %v2392 = vpop.f32.mrf.mxu0
        %v2393 = vadd.f32 %v2380, %v2392
        %v2394 = vpop.f32.mrf.mxu0
        %2395 = vdwg.mxu0
        %2396 = vmatpush.bf16.msra.mxu0 %v2054
        %2397 = vmatpush.bf16.msra.mxu0 %v2053
        %2398 = vmatpush.bf16.msra.mxu0 %v2052
        %2399 = vmatpush.bf16.msra.mxu0 %v2051
        %2400 = vmatpush.bf16.msra.mxu0 %v2050
        %2401 = vmatpush.bf16.msra.mxu0 %v2049
        %2402 = vmatpush.bf16.msra.mxu0 %v2048
        %2403 = vmatpush.bf16.msra.mxu0 %v2047
        %2404 = vmatmul.bf16.gmra.mxu0 %v1052
        %v2405 = vpop.f32.mrf.mxu0
        %v2406 = vadd.f32 %v2393, %v2405
        %v2407 = vpop.f32.mrf.mxu0
        %2408 = vdwg.mxu0
        %2409 = vmatpush.bf16.msra.mxu0 %v2062
        %2410 = vmatpush.bf16.msra.mxu0 %v2061
        %2411 = vmatpush.bf16.msra.mxu0 %v2060
        %2412 = vmatpush.bf16.msra.mxu0 %v2059
        %2413 = vmatpush.bf16.msra.mxu0 %v2058
        %2414 = vmatpush.bf16.msra.mxu0 %v2057
        %2415 = vmatpush.bf16.msra.mxu0 %v2056
        %2416 = vmatpush.bf16.msra.mxu0 %v2055
        %2417 = vmatmul.bf16.gmra.mxu0 %v1053
        %v2418 = vpop.f32.mrf.mxu0
        %v2419 = vadd.f32 %v2406, %v2418
        %v2420 = vpop.f32.mrf.mxu0
        %2421 = vdwg.mxu0
        %2422 = vmatpush.bf16.msra.mxu0 %v2070
        %2423 = vmatpush.bf16.msra.mxu0 %v2069
        %2424 = vmatpush.bf16.msra.mxu0 %v2068
        %2425 = vmatpush.bf16.msra.mxu0 %v2067
        %2426 = vmatpush.bf16.msra.mxu0 %v2066
        %2427 = vmatpush.bf16.msra.mxu0 %v2065
        %2428 = vmatpush.bf16.msra.mxu0 %v2064
        %2429 = vmatpush.bf16.msra.mxu0 %v2063
        %2430 = vmatmul.bf16.gmra.mxu0 %v1054
        %v2431 = vpop.f32.mrf.mxu0
        %v2432 = vadd.f32 %v2419, %v2431
        %v2433 = vpop.f32.mrf.mxu0
        %2434 = vdwg.mxu0
        %2435 = vmatpush.bf16.msra.mxu0 %v2078
        %2436 = vmatpush.bf16.msra.mxu0 %v2077
        %2437 = vmatpush.bf16.msra.mxu0 %v2076
        %2438 = vmatpush.bf16.msra.mxu0 %v2075
        %2439 = vmatpush.bf16.msra.mxu0 %v2074
        %2440 = vmatpush.bf16.msra.mxu0 %v2073
        %2441 = vmatpush.bf16.msra.mxu0 %v2072
        %2442 = vmatpush.bf16.msra.mxu0 %v2071
        %2443 = vmatmul.bf16.gmra.mxu0 %v1055
        %v2444 = vpop.f32.mrf.mxu0
        %v2445 = vadd.f32 %v2432, %v2444
        %v2446 = vpop.f32.mrf.mxu0
        %2447 = vdwg.mxu0
        %2448 = vmatpush.bf16.msra.mxu0 %v2086
        %2449 = vmatpush.bf16.msra.mxu0 %v2085
        %2450 = vmatpush.bf16.msra.mxu0 %v2084
        %2451 = vmatpush.bf16.msra.mxu0 %v2083
        %2452 = vmatpush.bf16.msra.mxu0 %v2082
        %2453 = vmatpush.bf16.msra.mxu0 %v2081
        %2454 = vmatpush.bf16.msra.mxu0 %v2080
        %2455 = vmatpush.bf16.msra.mxu0 %v2079
        %2456 = vmatmul.bf16.gmra.mxu0 %v1056
        %v2457 = vpop.f32.mrf.mxu0
        %v2458 = vadd.f32 %v2445, %v2457
        %v2459 = vpop.f32.mrf.mxu0
        %2460 = vdwg.mxu0
        %2461 = vmatpush.bf16.msra.mxu0 %v2094
        %2462 = vmatpush.bf16.msra.mxu0 %v2093
        %2463 = vmatpush.bf16.msra.mxu0 %v2092
        %2464 = vmatpush.bf16.msra.mxu0 %v2091
        %2465 = vmatpush.bf16.msra.mxu0 %v2090
        %2466 = vmatpush.bf16.msra.mxu0 %v2089
        %2467 = vmatpush.bf16.msra.mxu0 %v2088
        %2468 = vmatpush.bf16.msra.mxu0 %v2087
        %2469 = vmatmul.bf16.gmra.mxu0 %v1057
        %v2470 = vpop.f32.mrf.mxu0
        %v2471 = vadd.f32 %v2458, %v2470
        %v2472 = vpop.f32.mrf.mxu0
        %2473 = vdwg.mxu0
        %2474 = vmatpush.bf16.msra.mxu0 %v2102
        %2475 = vmatpush.bf16.msra.mxu0 %v2101
        %2476 = vmatpush.bf16.msra.mxu0 %v2100
        %2477 = vmatpush.bf16.msra.mxu0 %v2099
        %2478 = vmatpush.bf16.msra.mxu0 %v2098
        %2479 = vmatpush.bf16.msra.mxu0 %v2097
        %2480 = vmatpush.bf16.msra.mxu0 %v2096
        %2481 = vmatpush.bf16.msra.mxu0 %v2095
        %2482 = vmatmul.bf16.gmra.mxu0 %v1058
        %v2483 = vpop.f32.mrf.mxu0
        %v2484 = vadd.f32 %v2471, %v2483
        %v2485 = vpop.f32.mrf.mxu0
        %2486 = vdwg.mxu0
        %2487 = vmatpush.bf16.msra.mxu0 %v2110
        %2488 = vmatpush.bf16.msra.mxu0 %v2109
        %2489 = vmatpush.bf16.msra.mxu0 %v2108
        %2490 = vmatpush.bf16.msra.mxu0 %v2107
        %2491 = vmatpush.bf16.msra.mxu0 %v2106
        %2492 = vmatpush.bf16.msra.mxu0 %v2105
        %2493 = vmatpush.bf16.msra.mxu0 %v2104
        %2494 = vmatpush.bf16.msra.mxu0 %v2103
        %2495 = vmatmul.bf16.gmra.mxu0 %v1059
        %v2496 = vpop.f32.mrf.mxu0
        %v2497 = vadd.f32 %v2484, %v2496
        %v2498 = vpop.f32.mrf.mxu0
        %2499 = vdwg.mxu0
        %2500 = vmatpush.bf16.msra.mxu0 %v2118
        %2501 = vmatpush.bf16.msra.mxu0 %v2117
        %2502 = vmatpush.bf16.msra.mxu0 %v2116
        %2503 = vmatpush.bf16.msra.mxu0 %v2115
        %2504 = vmatpush.bf16.msra.mxu0 %v2114
        %2505 = vmatpush.bf16.msra.mxu0 %v2113
        %2506 = vmatpush.bf16.msra.mxu0 %v2112
        %2507 = vmatpush.bf16.msra.mxu0 %v2111
        %2508 = vmatmul.bf16.gmra.mxu0 %v1060
        %v2509 = vpop.f32.mrf.mxu0
        %v2510 = vadd.f32 %v2497, %v2509
        %v2511 = vpop.f32.mrf.mxu0
        %2512 = vdwg.mxu0
        %2513 = vmatpush.bf16.msra.mxu0 %v2126
        %2514 = vmatpush.bf16.msra.mxu0 %v2125
        %2515 = vmatpush.bf16.msra.mxu0 %v2124
        %2516 = vmatpush.bf16.msra.mxu0 %v2123
        %2517 = vmatpush.bf16.msra.mxu0 %v2122
        %2518 = vmatpush.bf16.msra.mxu0 %v2121
        %2519 = vmatpush.bf16.msra.mxu0 %v2120
        %2520 = vmatpush.bf16.msra.mxu0 %v2119
        %2521 = vmatmul.bf16.gmra.mxu0 %v1061
        %v2522 = vpop.f32.mrf.mxu0
        %v2523 = vadd.f32 %v2510, %v2522
        %v2524 = vpop.f32.mrf.mxu0
        %2525 = vdwg.mxu0
        %v2526 = vadd.f32 %v1062, %v2523
        %2527 = vst [vmem:[%s373] sm:$0xff] %v2526
        %p2528 = scmp.eq.s32.totalorder %s28, 1
        %p2529 = scmp.eq.s32.totalorder %s27, 0
        %p2530 = pnand %p2528, %p2529
        %p2531 = pneg %p2530
        // Predicated region
        $region61: #{tres_forward.1} parent=39 // pred_check
          _
        $region62: #{tres_forward.1} parent=39 // pred_check_branch
          %2533 = sbr.rel (%p2530) target = $region64
        $region63: #{tres_forward.1} parent=39 // pred_region
          %v2534 = vld [vmem:[%s373] sm:$0xff]
          %v2535 = vld [vmem:[#allocation7] sm:$0x1]
          %v2537 = vperm.slane %v2535, 0
          %v2539 = vadd.f32 %v2534, %v2537
          %2540 = vst [vmem:[%s373] sm:$0xff] %v2539
        $region64: #{tres_forward.1} parent=39 // pred_fallthru
          _
        %p2541 = scmp.lt.s32.totalorder %s27, 1
        %s2542 = scalar_select %p2541, %s27, 1
        %s2543 = smul.addr %s2542, 8
        %s2544 = scalar_lea.vmem %s5, %s2543
        // Predicated region
        $region65: #{tres_forward.1} parent=39 // pred_check
          %p2545 = pneg %p185
        $region66: #{tres_forward.1} parent=39 // pred_check_branch
          %2547 = sbr.rel (%p2545) target = $region68
        $region67: #{tres_forward.1} parent=39 // pred_region
          _
        $region68: #{tres_forward.1} parent=39 // pred_fallthru
          _
      $region40: #{tres_forward.1} parent=5 // pred_fallthru
        _
      %p2548 = scmp.le.s32.totalorder 2, %s18
      // Predicated region
      $region69: #{tres_forward.1} parent=5 // pred_check
        %p2549 = pneg %p2548
      $region70: #{tres_forward.1} parent=5 // pred_check_branch
        %2551 = sbr.rel (%p2549) target = $region72
      $region71: #{tres_forward.1} parent=5 // pred_region
        %s2552 = ssub.s32 %s18, 2
        // Predicated region
        $region73: #{tres_forward.1} parent=71 // pred_check
          %p2553 = pneg %p191
        $region74: #{tres_forward.1} parent=71 // pred_check_branch
          %2555 = sbr.rel (%p2553) target = $region76
        $region75: #{tres_forward.1} parent=71 // pred_region
          %p2556 = scmp.lt.s32.totalorder %s29, 1
          %s2557 = scalar_select %p2556, %s29, 1
          %s2558 = smul.addr %s2557, 8
          %s2559 = scalar_lea.vmem %s5, %s2558
        $region76: #{tres_forward.1} parent=71 // pred_fallthru
          _
      $region72: #{tres_forward.1} parent=5 // pred_fallthru
        _
    $region6: #{tres_forward.1} parent=1 // loop_footer
      %s22 = sadd.s32 1, %s18
    $region7: #{tres_forward.1} parent=1 // loop_footer_branch
      %17 = sbr.rel target = $region3
    $region8: #{tres_forward.1} parent=1 // loop_exit
      _
    %2560 = vsyncpa [#allocation3], 1
    %s2561 = scalar_lea.sflag [#allocation3], 1
    %2562 = vsyncpa %s2561, 1
    %2563 = vsyncpa [#allocation5], 1
    %s2564 = scalar_lea.sflag [#allocation5], 1
    %2565 = vsyncpa %s2564, 1
    %2566 = vsyncpa [#allocation8], 1

</llo_original>
